<compile_context>
chip_gen: v5e
topology: v5e:2x2
jax: 0.10.0
libtpu: 0.0.40
codegen_flags: <defaults>
</compile_context>

<pallas_src>
import functools

import jax
import jax.numpy as jnp
from jax.experimental import pallas as pl
from jax.experimental.pallas import tpu as pltpu

# Scoped-VMEM budget: well above the ~4-6 MiB tile footprint at the default
# 256-tile, and with >20% headroom under v7x's 64 MiB per-TensorCore VMEM.
_VMEM_LIMIT_BYTES = 48 * 1024 * 1024
_LANE = 128


def _pick_tile(n, pref=256):
    """Largest tile <= pref that divides n (falls back to the full extent)."""
    for t in (pref, 512, 256, 128, 64, 32, 16, 8):
        if t <= n and n % t == 0:
            return t
    return n


def _pad_features(x, multiple=_LANE):
    """Zero-pad the feature dim to a lane multiple (exact for dot products)."""
    d = x.shape[1]
    dp = ((d + multiple - 1) // multiple) * multiple
    if dp == d:
        return x
    return jnp.pad(x, ((0, 0), (0, dp - d)))


def _sqdist_tile(a, b):
    """Pairwise squared Euclidean distance between row tiles a:(M,D), b:(K,D)."""
    a_sq = jnp.sum(a * a, axis=1, keepdims=True)                 # (M, 1)
    b_sq = jnp.sum(b * b, axis=1, keepdims=True)                 # (K, 1)
    ab = jnp.dot(a, b.T, preferred_element_type=jnp.float32)     # MXU
    return jnp.maximum(a_sq + b_sq.T - 2.0 * ab, 0.0)


# --------------------------------------------------------------------------- #
# Pass 1: W_P tiles + row sums of S_dist                                      #
# --------------------------------------------------------------------------- #
def prep_kernel(t_i_ref, t_j_ref, s_i_ref, s_j_ref, wp_ref, rowsum_ref,
                *, inv_sigma):
    j_blk = pl.program_id(1)

    # W_P tile: exp(-||t_hat_i - t_hat_j||^2 / sigma), t L2-normalised per row.
    ti = t_i_ref[...].astype(jnp.float32)
    tj = t_j_ref[...].astype(jnp.float32)
    ti = ti / jnp.maximum(jnp.sqrt(jnp.sum(ti * ti, axis=1, keepdims=True)), 1e-12)
    tj = tj / jnp.maximum(jnp.sqrt(jnp.sum(tj * tj, axis=1, keepdims=True)), 1e-12)
    wp_ref[...] = jnp.exp(-_sqdist_tile(ti, tj) * inv_sigma)

    # Row sums of S_dist, accumulated across the (arbitrary) j axis; S_dist is
    # recomputed per tile inside the loss kernel instead of round-tripping HBM.
    si = s_i_ref[...].astype(jnp.float32)
    sj = s_j_ref[...].astype(jnp.float32)
    s_tile = jnp.sqrt(_sqdist_tile(si, sj))

    @pl.when(j_blk == 0)
    def _():
        rowsum_ref[...] = jnp.zeros_like(rowsum_ref)

    rowsum_ref[...] += jnp.sum(s_tile, axis=1, keepdims=True)


# --------------------------------------------------------------------------- #
# Pass 2: W_C_tilda = V * (V @ V^T) / rowsum(V)                               #
# --------------------------------------------------------------------------- #
def wct_kernel(v_ik_ref, v_kj_ref, v_ij_ref, inv_r_ref, wct_ref, acc_ref):
    k_blk = pl.program_id(2)

    @pl.when(k_blk == 0)
    def _():
        acc_ref[...] = jnp.zeros_like(acc_ref)

    # V is a symmetric 0/1 mask, so V @ V == V @ V^T and the bf16 operands are
    # exact; the integer-valued neighbour counts accumulate in f32 on the MXU.
    acc_ref[...] += jnp.dot(v_ik_ref[...], v_kj_ref[...],
                            preferred_element_type=jnp.float32)

    @pl.when(k_blk == pl.num_programs(2) - 1)
    def _():
        wct_ref[...] = (v_ij_ref[...].astype(jnp.float32)
                        * acc_ref[...]
                        * inv_r_ref[...])


# --------------------------------------------------------------------------- #
# Pass 3: fused loss                                                          #
# --------------------------------------------------------------------------- #
def loss_kernel(s_i_ref, s_j_ref, inv_rm_ref, wp_ref,
                g_i_ref, g_j_ref, wct_kj_ref, wct_ki_ref,
                part_ref, hij_ref, hji_ref, acc_ref,
                *, delta, inv_kh):
    i_blk = pl.program_id(0)
    j_blk = pl.program_id(1)
    k_blk = pl.program_id(2)
    last_j = pl.num_programs(1) - 1
    last_k = pl.num_programs(2) - 1

    @pl.when(jnp.logical_and(j_blk == 0, k_blk == 0))
    def _():
        acc_ref[...] = jnp.zeros_like(acc_ref)

    @pl.when(k_blk == 0)
    def _():
        hij_ref[...] = jnp.zeros_like(hij_ref)
        hji_ref[...] = jnp.zeros_like(hji_ref)

    # W_C_hat blocks, accumulated over the contraction (k) axis:
    #   H_ij += G[i,k] @ W_C_tilda[k,j]   and   H_ji += G[j,k] @ W_C_tilda[k,i]
    # G is 0/1 stored in bf16 (exact, halves its HBM traffic); the 1/k_half
    # scale is applied after the matmul.  W_C_tilda stays f32 because its
    # values are not exactly representable in bf16.
    # TODO(synk): this dense 0/1 matmul could become a k_half-row DMA gather
    # driven by scalar-prefetched half_idx; kept as a fused MXU matmul (no
    # materialised W_C_hat) for robustness.
    hij_ref[...] += jnp.dot(g_i_ref[...], wct_kj_ref[...],
                            preferred_element_type=jnp.float32)
    hji_ref[...] += jnp.dot(g_j_ref[...], wct_ki_ref[...],
                            preferred_element_type=jnp.float32)

    @pl.when(k_blk == last_k)
    def _():
        # S_dist tile recomputed from the small (tile, D) embedding slabs and
        # normalised by the precomputed per-row reciprocal of its row mean.
        si = s_i_ref[...].astype(jnp.float32)
        sj = s_j_ref[...].astype(jnp.float32)
        s_tile = jnp.sqrt(_sqdist_tile(si, sj)) * inv_rm_ref[...]

        # Block-wise symmetric average of W_C_hat (no full (N, N) transpose).
        w_c = (hij_ref[...] + hji_ref[...].T) * (0.5 * inv_kh)
        w = (wp_ref[...] + w_c) * 0.5

        pull = s_tile * s_tile * w            # S_dist >= 0, so relu() is dropped
        push = jnp.maximum(delta - s_tile, 0.0)
        push = push * push * (1.0 - w)
        contrib = pull + push

        # Only diagonal tiles (i == j) need the off-diagonal mask.
        @pl.when(i_blk == j_blk)
        def _():
            rr = jax.lax.broadcasted_iota(jnp.int32, contrib.shape, 0)
            cc = jax.lax.broadcasted_iota(jnp.int32, contrib.shape, 1)
            acc_ref[...] += jnp.sum(
                jnp.where(rr != cc, contrib, 0.0)).reshape(1, 1)

        @pl.when(i_blk != j_blk)
        def _():
            acc_ref[...] += jnp.sum(contrib).reshape(1, 1)

        # Flush this row-block's partial sum (lane-padded block so the output
        # satisfies the (8, 128) tiling constraint; only [i, 0, 0] is read).
        @pl.when(j_blk == last_j)
        def _():
            part_ref[...] = jnp.broadcast_to(
                acc_ref[...].reshape(1, 1, 1), (1, 8, 128))


# --------------------------------------------------------------------------- #
# Wrapper                                                                     #
# --------------------------------------------------------------------------- #
def sg_loss(s_emb, t_emb, *, sigma=1.0, delta=1.0, view=2, disable_mu=0,
            topk=10, block=256):
    """JAX/Pallas equivalent of SGLoss.forward (defaults match the PyTorch module)."""
    del view  # unused by the forward pass (kept for API parity)
    N = s_emb.shape[0]
    kh = int(round(topk / 2))

    if disable_mu:
        s_emb = s_emb / jnp.maximum(
            jnp.sqrt(jnp.sum(s_emb * s_emb, axis=1, keepdims=True)), 1e-12)

    # Tile size: 256 fits the v5e/v6e/v7x VMEM budgets with large headroom;
    # pass block=512 on v6e (128 MiB VMEM) to amortise per-grid-step overhead.
    bm = _pick_tile(N, block)
    nb = N // bm

    # Zero-pad the feature dim to a lane multiple so the D-contraction matmuls
    # feed the MXU full-width tiles (exact for dot products and norms).
    s_pad = _pad_features(s_emb.astype(jnp.float32))
    t_pad = _pad_features(t_emb.astype(jnp.float32))
    d_s = s_pad.shape[1]
    d_t = t_pad.shape[1]

    cparams_prep = pltpu.CompilerParams(
        dimension_semantics=("parallel", "arbitrary"),
        vmem_limit_bytes=_VMEM_LIMIT_BYTES)
    cparams_wct = pltpu.CompilerParams(
        dimension_semantics=("parallel", "parallel", "arbitrary"),
        vmem_limit_bytes=_VMEM_LIMIT_BYTES)
    cparams_loss = pltpu.CompilerParams(
        dimension_semantics=("parallel", "arbitrary", "arbitrary"),
        vmem_limit_bytes=_VMEM_LIMIT_BYTES)

    # --- pass 1: W_P and the row sums of S_dist -----------------------------
    wp, s_rowsum = pl.pallas_call(
        functools.partial(prep_kernel, inv_sigma=1.0 / float(sigma)),
        grid=(nb, nb),
        in_specs=[
            pl.BlockSpec((bm, d_t), lambda i, j: (i, 0)),
            pl.BlockSpec((bm, d_t), lambda i, j: (j, 0)),
            pl.BlockSpec((bm, d_s), lambda i, j: (i, 0)),
            pl.BlockSpec((bm, d_s), lambda i, j: (j, 0)),
        ],
        out_specs=(
            pl.BlockSpec((bm, bm), lambda i, j: (i, j)),
            pl.BlockSpec((bm, 1), lambda i, j: (i, 0)),
        ),
        out_shape=(
            jax.ShapeDtypeStruct((N, N), jnp.float32),
            jax.ShapeDtypeStruct((N, 1), jnp.float32),
        ),
        compiler_params=cparams_prep,
    )(t_pad, t_pad, s_pad, s_pad)

    # 1 / S_dist.mean(1): per-row reciprocal so the kernels multiply instead of
    # doing full-matrix divides (no eps guard, matching the PyTorch reference).
    inv_rmean = jnp.float32(N) / s_rowsum

    # --- JAX glue: top-k neighbour graph -------------------------------------
    # TODO(synk): top-k selection and the one-hot / mutual-kNN scatter building
    # V and G are data-dependent gather/scatter; they stay in plain JAX glue.
    _, idx = jax.lax.top_k(wp, topk)                    # (N, topk); self included
    rows = jnp.arange(N, dtype=jnp.int32)[:, None]
    w_nn = jnp.zeros((N, N), jnp.bool_).at[rows, idx].set(True)
    v_bool = jnp.logical_and(w_nn, w_nn.T)              # == ((W_NN + W_NN.T)/2 == 1)
    v_bf16 = v_bool.astype(jnp.bfloat16)                # exact 0/1 MXU operand
    inv_r = 1.0 / jnp.sum(v_bool, axis=1, keepdims=True).astype(jnp.float32)

    half_idx = idx[:, :kh]
    g_bf16 = jnp.zeros((N, N), jnp.bfloat16).at[rows, half_idx].set(1.0)

    # --- pass 2: W_C_tilda ----------------------------------------------------
    w_c_tilda = pl.pallas_call(
        wct_kernel,
        grid=(nb, nb, nb),
        in_specs=[
            pl.BlockSpec((bm, bm), lambda i, j, k: (i, k)),   # V[i, k]
            pl.BlockSpec((bm, bm), lambda i, j, k: (k, j)),   # V[k, j]
            pl.BlockSpec((bm, bm), lambda i, j, k: (i, j)),   # V[i, j] mask
            pl.BlockSpec((bm, 1), lambda i, j, k: (i, 0)),    # 1 / rowsum(V)
        ],
        out_specs=pl.BlockSpec((bm, bm), lambda i, j, k: (i, j)),
        out_shape=jax.ShapeDtypeStruct((N, N), jnp.float32),
        scratch_shapes=[pltpu.VMEM((bm, bm), jnp.float32)],
        compiler_params=cparams_wct,
    )(v_bf16, v_bf16, v_bf16, inv_r)

    # --- pass 3: fused loss ---------------------------------------------------
    partials = pl.pallas_call(
        functools.partial(loss_kernel, delta=float(delta), inv_kh=1.0 / float(kh)),
        grid=(nb, nb, nb),
        in_specs=[
            pl.BlockSpec((bm, d_s), lambda i, j, k: (i, 0)),  # s_emb i-rows
            pl.BlockSpec((bm, d_s), lambda i, j, k: (j, 0)),  # s_emb j-rows
            pl.BlockSpec((bm, 1), lambda i, j, k: (i, 0)),    # 1 / row-mean
            pl.BlockSpec((bm, bm), lambda i, j, k: (i, j)),   # W_P tile
            pl.BlockSpec((bm, bm), lambda i, j, k: (i, k)),   # G[i, k] (bf16 0/1)
            pl.BlockSpec((bm, bm), lambda i, j, k: (j, k)),   # G[j, k]
            pl.BlockSpec((bm, bm), lambda i, j, k: (k, j)),   # W_C_tilda[k, j]
            pl.BlockSpec((bm, bm), lambda i, j, k: (k, i)),   # W_C_tilda[k, i]
        ],
        out_specs=pl.BlockSpec((1, 8, 128), lambda i, j, k: (i, 0, 0)),
        out_shape=jax.ShapeDtypeStruct((nb, 8, 128), jnp.float32),
        scratch_shapes=[
            pltpu.VMEM((bm, bm), jnp.float32),   # H_ij accumulator
            pltpu.VMEM((bm, bm), jnp.float32),   # H_ji accumulator
            pltpu.VMEM((1, 1), jnp.float32),     # per-row-block loss partial
        ],
        compiler_params=cparams_loss,
    )(s_pad, s_pad, inv_rmean, wp, g_bf16, g_bf16, w_c_tilda, w_c_tilda)

    return jnp.sum(partials[:, 0, 0]) / (N * (N - 1))


if __name__ == "__main__":
    key = jax.random.PRNGKey(0)
    k1, k2 = jax.random.split(key)
    N, D = 16, 32                       # small demo shapes; topk=10 needs N >= 10
    s_emb = jax.random.normal(k1, (N, D), dtype=jnp.float32)
    t_emb = jax.random.normal(k2, (N, D), dtype=jnp.float32)

    loss = jax.jit(sg_loss)(s_emb, t_emb)
    jax.block_until_ready(loss)
    print("KERNEL_OK")
</pallas_src>

<mosaic_0001>
module attributes {stable_mosaic.version = 11 : i64} {
  func.func @prep_kernel(%arg0: i32, %arg1: i32, %arg2: memref<16x128xf32, #tpu.memory_space<vmem>>, %arg3: memref<16x128xf32, #tpu.memory_space<vmem>>, %arg4: memref<16x128xf32, #tpu.memory_space<vmem>>, %arg5: memref<16x128xf32, #tpu.memory_space<vmem>>, %arg6: memref<16x16xf32, #tpu.memory_space<vmem>>, %arg7: memref<16x1xf32, #tpu.memory_space<vmem>>) attributes {dimension_semantics = [#tpu.dimension_semantics<parallel>, #tpu.dimension_semantics<arbitrary>], iteration_bounds = array<i64: 1, 1>, scalar_prefetch = 0 : i64, scratch_operands = 0 : i64, tpu.core_type = #tpu.core_type<tc>, window_params = [{transform_indices = @transform_0, window_bounds = array<i64: 16, 128>}, {transform_indices = @transform_1, window_bounds = array<i64: 16, 128>}, {transform_indices = @transform_2, window_bounds = array<i64: 16, 128>}, {transform_indices = @transform_3, window_bounds = array<i64: 16, 128>}, {transform_indices = @transform_4, window_bounds = array<i64: 16, 16>}, {transform_indices = @transform_5, window_bounds = array<i64: 16, 1>}]} {
    %c0 = arith.constant 0 : index
    %c0_0 = arith.constant 0 : index
    %0 = vector.load %arg2[%c0, %c0_0] : memref<16x128xf32, #tpu.memory_space<vmem>>, vector<16x128xf32>
    %c0_1 = arith.constant 0 : index
    %c0_2 = arith.constant 0 : index
    %1 = vector.load %arg3[%c0_1, %c0_2] : memref<16x128xf32, #tpu.memory_space<vmem>>, vector<16x128xf32>
    %2 = arith.mulf %0, %0 : vector<16x128xf32>
    %cst = arith.constant dense<0.000000e+00> : vector<16xf32>
    %3 = vector.multi_reduction <add>, %2, %cst [1] : vector<16x128xf32> to vector<16xf32>
    %4 = vector.shape_cast %3 : vector<16xf32> to vector<16x1xf32>
    %5 = math.sqrt %4 : vector<16x1xf32>
    %cst_3 = arith.constant 9.99999996E-13 : f32
    %6 = vector.broadcast %cst_3 : f32 to vector<16x1xf32>
    %7 = arith.maximumf %5, %6 : vector<16x1xf32>
    %8 = vector.broadcast %7 : vector<16x1xf32> to vector<16x128xf32>
    %9 = arith.divf %0, %8 : vector<16x128xf32>
    %10 = arith.mulf %1, %1 : vector<16x128xf32>
    %cst_4 = arith.constant dense<0.000000e+00> : vector<16xf32>
    %11 = vector.multi_reduction <add>, %10, %cst_4 [1] : vector<16x128xf32> to vector<16xf32>
    %12 = vector.shape_cast %11 : vector<16xf32> to vector<16x1xf32>
    %13 = math.sqrt %12 : vector<16x1xf32>
    %cst_5 = arith.constant 9.99999996E-13 : f32
    %14 = vector.broadcast %cst_5 : f32 to vector<16x1xf32>
    %15 = arith.maximumf %13, %14 : vector<16x1xf32>
    %16 = vector.broadcast %15 : vector<16x1xf32> to vector<16x128xf32>
    %17 = arith.divf %1, %16 : vector<16x128xf32>
    %18 = arith.mulf %9, %9 : vector<16x128xf32>
    %cst_6 = arith.constant dense<0.000000e+00> : vector<16xf32>
    %19 = vector.multi_reduction <add>, %18, %cst_6 [1] : vector<16x128xf32> to vector<16xf32>
    %20 = vector.shape_cast %19 : vector<16xf32> to vector<16x1xf32>
    %21 = arith.mulf %17, %17 : vector<16x128xf32>
    %cst_7 = arith.constant dense<0.000000e+00> : vector<16xf32>
    %22 = vector.multi_reduction <add>, %21, %cst_7 [1] : vector<16x128xf32> to vector<16xf32>
    %23 = vector.shape_cast %22 : vector<16xf32> to vector<16x1xf32>
    %24 = tpu.transpose %17, [1, 0] : vector<16x128xf32> -> vector<128x16xf32>
    %cst_8 = arith.constant dense<0.000000e+00> : vector<16x16xf32>
    %25 = tpu.matmul %9, %24, %cst_8 {dimension_numbers = #tpu.dot_dimension_numbers<[1], [0], [0], [1], [0, 0, 1, 1], [], []>} : vector<16x128xf32>, vector<128x16xf32>, vector<16x16xf32> -> vector<16x16xf32>
    %26 = tpu.transpose %23, [1, 0] : vector<16x1xf32> -> vector<1x16xf32>
    %27 = vector.broadcast %20 : vector<16x1xf32> to vector<16x16xf32>
    %28 = vector.broadcast %26 : vector<1x16xf32> to vector<16x16xf32>
    %29 = arith.addf %27, %28 : vector<16x16xf32>
    %cst_9 = arith.constant 2.000000e+00 : f32
    %30 = vector.broadcast %cst_9 : f32 to vector<16x16xf32>
    %31 = arith.mulf %30, %25 : vector<16x16xf32>
    %32 = arith.subf %29, %31 : vector<16x16xf32>
    %cst_10 = arith.constant 0.000000e+00 : f32
    %33 = vector.broadcast %cst_10 : f32 to vector<16x16xf32>
    %34 = arith.maximumf %32, %33 : vector<16x16xf32>
    %cst_11 = arith.constant 0.000000e+00 : f32
    %35 = vector.broadcast %cst_11 : f32 to vector<16x16xf32>
    %36 = arith.subf %35, %34 : vector<16x16xf32>
    %cst_12 = arith.constant 1.000000e+00 : f32
    %37 = vector.broadcast %cst_12 : f32 to vector<16x16xf32>
    %38 = arith.mulf %36, %37 : vector<16x16xf32>
    %39 = math.exp %38 : vector<16x16xf32>
    %c0_13 = arith.constant 0 : index
    %c0_14 = arith.constant 0 : index
    %40 = vector.load %arg6[%c0_13, %c0_14] : memref<16x16xf32, #tpu.memory_space<vmem>>, vector<16x16xf32>
    tpu.vector_store %arg6[%c0_13, %c0_14], %39 {strides = array<i32>} : memref<16x16xf32, #tpu.memory_space<vmem>>, vector<16x16xf32>,
    %c0_15 = arith.constant 0 : index
    %c0_16 = arith.constant 0 : index
    %41 = vector.load %arg4[%c0_15, %c0_16] : memref<16x128xf32, #tpu.memory_space<vmem>>, vector<16x128xf32>
    %c0_17 = arith.constant 0 : index
    %c0_18 = arith.constant 0 : index
    %42 = vector.load %arg5[%c0_17, %c0_18] : memref<16x128xf32, #tpu.memory_space<vmem>>, vector<16x128xf32>
    %43 = arith.mulf %41, %41 : vector<16x128xf32>
    %cst_19 = arith.constant dense<0.000000e+00> : vector<16xf32>
    %44 = vector.multi_reduction <add>, %43, %cst_19 [1] : vector<16x128xf32> to vector<16xf32>
    %45 = vector.shape_cast %44 : vector<16xf32> to vector<16x1xf32>
    %46 = arith.mulf %42, %42 : vector<16x128xf32>
    %cst_20 = arith.constant dense<0.000000e+00> : vector<16xf32>
    %47 = vector.multi_reduction <add>, %46, %cst_20 [1] : vector<16x128xf32> to vector<16xf32>
    %48 = vector.shape_cast %47 : vector<16xf32> to vector<16x1xf32>
    %49 = tpu.transpose %42, [1, 0] : vector<16x128xf32> -> vector<128x16xf32>
    %cst_21 = arith.constant dense<0.000000e+00> : vector<16x16xf32>
    %50 = tpu.matmul %41, %49, %cst_21 {dimension_numbers = #tpu.dot_dimension_numbers<[1], [0], [0], [1], [0, 0, 1, 1], [], []>} : vector<16x128xf32>, vector<128x16xf32>, vector<16x16xf32> -> vector<16x16xf32>
    %51 = tpu.transpose %48, [1, 0] : vector<16x1xf32> -> vector<1x16xf32>
    %52 = vector.broadcast %45 : vector<16x1xf32> to vector<16x16xf32>
    %53 = vector.broadcast %51 : vector<1x16xf32> to vector<16x16xf32>
    %54 = arith.addf %52, %53 : vector<16x16xf32>
    %cst_22 = arith.constant 2.000000e+00 : f32
    %55 = vector.broadcast %cst_22 : f32 to vector<16x16xf32>
    %56 = arith.mulf %55, %50 : vector<16x16xf32>
    %57 = arith.subf %54, %56 : vector<16x16xf32>
    %cst_23 = arith.constant 0.000000e+00 : f32
    %58 = vector.broadcast %cst_23 : f32 to vector<16x16xf32>
    %59 = arith.maximumf %57, %58 : vector<16x16xf32>
    %60 = math.sqrt %59 : vector<16x16xf32>
    %c0_i32 = arith.constant 0 : i32
    %61 = arith.cmpi eq, %arg1, %c0_i32 : i32
    %62 = arith.extui %61 : i1 to i32
    %c0_i32_24 = arith.constant 0 : i32
    %63 = arith.cmpi ne, %62, %c0_i32_24 : i32
    scf.if %63 {
      %cst_30 = arith.constant 0.000000e+00 : f32
      %69 = vector.broadcast %cst_30 : f32 to vector<16x1xf32>
      %c0_31 = arith.constant 0 : index
      %c0_32 = arith.constant 0 : index
      %70 = vector.load %arg7[%c0_31, %c0_32] : memref<16x1xf32, #tpu.memory_space<vmem>>, vector<16x1xf32>
      tpu.vector_store %arg7[%c0_31, %c0_32], %69 {strides = array<i32>} : memref<16x1xf32, #tpu.memory_space<vmem>>, vector<16x1xf32>,
    } else {
    }
    %c0_25 = arith.constant 0 : index
    %c0_26 = arith.constant 0 : index
    %64 = vector.load %arg7[%c0_25, %c0_26] : memref<16x1xf32, #tpu.memory_space<vmem>>, vector<16x1xf32>
    %cst_27 = arith.constant dense<0.000000e+00> : vector<16xf32>
    %65 = vector.multi_reduction <add>, %60, %cst_27 [1] : vector<16x16xf32> to vector<16xf32>
    %66 = vector.shape_cast %65 : vector<16xf32> to vector<16x1xf32>
    %67 = arith.addf %64, %66 : vector<16x1xf32>
    %c0_28 = arith.constant 0 : index
    %c0_29 = arith.constant 0 : index
    %68 = vector.load %arg7[%c0_28, %c0_29] : memref<16x1xf32, #tpu.memory_space<vmem>>, vector<16x1xf32>
    tpu.vector_store %arg7[%c0_28, %c0_29], %67 {strides = array<i32>} : memref<16x1xf32, #tpu.memory_space<vmem>>, vector<16x1xf32>,
    return
  }
  func.func @transform_0(%arg0: i32, %arg1: i32) -> (i32, i32) {
    %c0_i32 = arith.constant 0 : i32
    %c0_i32_0 = arith.constant 0 : i32
    return %arg0, %c0_i32 : i32, i32
  }
  func.func @transform_1(%arg0: i32, %arg1: i32) -> (i32, i32) {
    %c0_i32 = arith.constant 0 : i32
    %c0_i32_0 = arith.constant 0 : i32
    return %arg1, %c0_i32 : i32, i32
  }
  func.func @transform_2(%arg0: i32, %arg1: i32) -> (i32, i32) {
    %c0_i32 = arith.constant 0 : i32
    %c0_i32_0 = arith.constant 0 : i32
    return %arg0, %c0_i32 : i32, i32
  }
  func.func @transform_3(%arg0: i32, %arg1: i32) -> (i32, i32) {
    %c0_i32 = arith.constant 0 : i32
    %c0_i32_0 = arith.constant 0 : i32
    return %arg1, %c0_i32 : i32, i32
  }
  func.func @transform_4(%arg0: i32, %arg1: i32) -> (i32, i32) {
    %c0_i32 = arith.constant 0 : i32
    return %arg0, %arg1 : i32, i32
  }
  func.func @transform_5(%arg0: i32, %arg1: i32) -> (i32, i32) {
    %c0_i32 = arith.constant 0 : i32
    %c0_i32_0 = arith.constant 0 : i32
    return %arg0, %c0_i32 : i32, i32
  }
}

module attributes {stable_mosaic.version = 11 : i64} {
  func.func @wct_kernel(%arg0: i32, %arg1: i32, %arg2: i32, %arg3: memref<16x16xbf16, #tpu.memory_space<vmem>>, %arg4: memref<16x16xbf16, #tpu.memory_space<vmem>>, %arg5: memref<16x16xbf16, #tpu.memory_space<vmem>>, %arg6: memref<16x1xf32, #tpu.memory_space<vmem>>, %arg7: memref<16x16xf32, #tpu.memory_space<vmem>>, %arg8: memref<16x16xf32, #tpu.memory_space<vmem>>) attributes {dimension_semantics = [#tpu.dimension_semantics<parallel>, #tpu.dimension_semantics<parallel>, #tpu.dimension_semantics<arbitrary>], iteration_bounds = array<i64: 1, 1, 1>, scalar_prefetch = 0 : i64, scratch_operands = 1 : i64, tpu.core_type = #tpu.core_type<tc>, window_params = [{transform_indices = @transform_0, window_bounds = array<i64: 16, 16>}, {transform_indices = @transform_1, window_bounds = array<i64: 16, 16>}, {transform_indices = @transform_2, window_bounds = array<i64: 16, 16>}, {transform_indices = @transform_3, window_bounds = array<i64: 16, 1>}, {transform_indices = @transform_4, window_bounds = array<i64: 16, 16>}]} {
    %c0_i32 = arith.constant 0 : i32
    %0 = arith.cmpi eq, %arg2, %c0_i32 : i32
    %1 = arith.extui %0 : i1 to i32
    %c0_i32_0 = arith.constant 0 : i32
    %2 = arith.cmpi ne, %1, %c0_i32_0 : i32
    scf.if %2 {
      %cst_10 = arith.constant 0.000000e+00 : f32
      %12 = vector.broadcast %cst_10 : f32 to vector<16x16xf32>
      %c0_11 = arith.constant 0 : index
      %c0_12 = arith.constant 0 : index
      %13 = vector.load %arg8[%c0_11, %c0_12] : memref<16x16xf32, #tpu.memory_space<vmem>>, vector<16x16xf32>
      tpu.vector_store %arg8[%c0_11, %c0_12], %12 {strides = array<i32>} : memref<16x16xf32, #tpu.memory_space<vmem>>, vector<16x16xf32>,
    } else {
    }
    %c0 = arith.constant 0 : index
    %c0_1 = arith.constant 0 : index
    %3 = vector.load %arg8[%c0, %c0_1] : memref<16x16xf32, #tpu.memory_space<vmem>>, vector<16x16xf32>
    %c0_2 = arith.constant 0 : index
    %c0_3 = arith.constant 0 : index
    %4 = vector.load %arg3[%c0_2, %c0_3] : memref<16x16xbf16, #tpu.memory_space<vmem>>, vector<16x16xbf16>
    %c0_4 = arith.constant 0 : index
    %c0_5 = arith.constant 0 : index
    %5 = vector.load %arg4[%c0_4, %c0_5] : memref<16x16xbf16, #tpu.memory_space<vmem>>, vector<16x16xbf16>
    %cst = arith.constant dense<0.000000e+00> : vector<16x16xf32>
    %6 = tpu.matmul %4, %5, %cst {dimension_numbers = #tpu.dot_dimension_numbers<[1], [0], [0], [1], [0, 0, 1, 1], [], []>} : vector<16x16xbf16>, vector<16x16xbf16>, vector<16x16xf32> -> vector<16x16xf32>
    %7 = arith.addf %3, %6 : vector<16x16xf32>
    %c0_6 = arith.constant 0 : index
    %c0_7 = arith.constant 0 : index
    %8 = vector.load %arg8[%c0_6, %c0_7] : memref<16x16xf32, #tpu.memory_space<vmem>>, vector<16x16xf32>
    tpu.vector_store %arg8[%c0_6, %c0_7], %7 {strides = array<i32>} : memref<16x16xf32, #tpu.memory_space<vmem>>, vector<16x16xf32>,
    %c0_i32_8 = arith.constant 0 : i32
    %9 = arith.cmpi eq, %arg2, %c0_i32_8 : i32
    %10 = arith.extui %9 : i1 to i32
    %c0_i32_9 = arith.constant 0 : i32
    %11 = arith.cmpi ne, %10, %c0_i32_9 : i32
    scf.if %11 {
      %c0_10 = arith.constant 0 : index
      %c0_11 = arith.constant 0 : index
      %12 = vector.load %arg5[%c0_10, %c0_11] : memref<16x16xbf16, #tpu.memory_space<vmem>>, vector<16x16xbf16>
      %13 = arith.extf %12 : vector<16x16xbf16> to vector<16x16xf32>
      %c0_12 = arith.constant 0 : index
      %c0_13 = arith.constant 0 : index
      %14 = vector.load %arg8[%c0_12, %c0_13] : memref<16x16xf32, #tpu.memory_space<vmem>>, vector<16x16xf32>
      %15 = arith.mulf %13, %14 : vector<16x16xf32>
      %c0_14 = arith.constant 0 : index
      %c0_15 = arith.constant 0 : index
      %16 = vector.load %arg6[%c0_14, %c0_15] : memref<16x1xf32, #tpu.memory_space<vmem>>, vector<16x1xf32>
      %17 = vector.broadcast %16 : vector<16x1xf32> to vector<16x16xf32>
      %18 = arith.mulf %15, %17 : vector<16x16xf32>
      %c0_16 = arith.constant 0 : index
      %c0_17 = arith.constant 0 : index
      %19 = vector.load %arg7[%c0_16, %c0_17] : memref<16x16xf32, #tpu.memory_space<vmem>>, vector<16x16xf32>
      tpu.vector_store %arg7[%c0_16, %c0_17], %18 {strides = array<i32>} : memref<16x16xf32, #tpu.memory_space<vmem>>, vector<16x16xf32>,
    } else {
    }
    return
  }
  func.func @transform_0(%arg0: i32, %arg1: i32, %arg2: i32) -> (i32, i32) {
    %c0_i32 = arith.constant 0 : i32
    return %arg0, %arg2 : i32, i32
  }
  func.func @transform_1(%arg0: i32, %arg1: i32, %arg2: i32) -> (i32, i32) {
    %c0_i32 = arith.constant 0 : i32
    return %arg2, %arg1 : i32, i32
  }
  func.func @transform_2(%arg0: i32, %arg1: i32, %arg2: i32) -> (i32, i32) {
    %c0_i32 = arith.constant 0 : i32
    return %arg0, %arg1 : i32, i32
  }
  func.func @transform_3(%arg0: i32, %arg1: i32, %arg2: i32) -> (i32, i32) {
    %c0_i32 = arith.constant 0 : i32
    %c0_i32_0 = arith.constant 0 : i32
    return %arg0, %c0_i32 : i32, i32
  }
  func.func @transform_4(%arg0: i32, %arg1: i32, %arg2: i32) -> (i32, i32) {
    %c0_i32 = arith.constant 0 : i32
    return %arg0, %arg1 : i32, i32
  }
}

module attributes {stable_mosaic.version = 11 : i64} {
  func.func @loss_kernel(%arg0: i32, %arg1: i32, %arg2: i32, %arg3: memref<16x128xf32, #tpu.memory_space<vmem>>, %arg4: memref<16x128xf32, #tpu.memory_space<vmem>>, %arg5: memref<16x1xf32, #tpu.memory_space<vmem>>, %arg6: memref<16x16xf32, #tpu.memory_space<vmem>>, %arg7: memref<16x16xbf16, #tpu.memory_space<vmem>>, %arg8: memref<16x16xbf16, #tpu.memory_space<vmem>>, %arg9: memref<16x16xf32, #tpu.memory_space<vmem>>, %arg10: memref<16x16xf32, #tpu.memory_space<vmem>>, %arg11: memref<1x8x128xf32, #tpu.memory_space<vmem>>, %arg12: memref<16x16xf32, #tpu.memory_space<vmem>>, %arg13: memref<16x16xf32, #tpu.memory_space<vmem>>, %arg14: memref<1x1xf32, #tpu.memory_space<vmem>>) attributes {dimension_semantics = [#tpu.dimension_semantics<parallel>, #tpu.dimension_semantics<arbitrary>, #tpu.dimension_semantics<arbitrary>], iteration_bounds = array<i64: 1, 1, 1>, scalar_prefetch = 0 : i64, scratch_operands = 3 : i64, tpu.core_type = #tpu.core_type<tc>, window_params = [{transform_indices = @transform_0, window_bounds = array<i64: 16, 128>}, {transform_indices = @transform_1, window_bounds = array<i64: 16, 128>}, {transform_indices = @transform_2, window_bounds = array<i64: 16, 1>}, {transform_indices = @transform_3, window_bounds = array<i64: 16, 16>}, {transform_indices = @transform_4, window_bounds = array<i64: 16, 16>}, {transform_indices = @transform_5, window_bounds = array<i64: 16, 16>}, {transform_indices = @transform_6, window_bounds = array<i64: 16, 16>}, {transform_indices = @transform_7, window_bounds = array<i64: 16, 16>}, {transform_indices = @transform_8, window_bounds = array<i64: 1, 8, 128>}]} {
    %c0_i32 = arith.constant 0 : i32
    %0 = arith.cmpi eq, %arg1, %c0_i32 : i32
    %c0_i32_0 = arith.constant 0 : i32
    %1 = arith.cmpi eq, %arg2, %c0_i32_0 : i32
    %2 = arith.andi %0, %1 : i1
    %3 = arith.extui %2 : i1 to i32
    %c0_i32_1 = arith.constant 0 : i32
    %4 = arith.cmpi ne, %3, %c0_i32_1 : i32
    scf.if %4 {
      %cst_22 = arith.constant 0.000000e+00 : f32
      %23 = vector.broadcast %cst_22 : f32 to vector<1x1xf32>
      %c0_23 = arith.constant 0 : index
      %c0_24 = arith.constant 0 : index
      %24 = vector.load %arg14[%c0_23, %c0_24] : memref<1x1xf32, #tpu.memory_space<vmem>>, vector<1x1xf32>
      tpu.vector_store %arg14[%c0_23, %c0_24], %23 {strides = array<i32>} : memref<1x1xf32, #tpu.memory_space<vmem>>, vector<1x1xf32>,
    } else {
    }
    %c0_i32_2 = arith.constant 0 : i32
    %5 = arith.cmpi eq, %arg2, %c0_i32_2 : i32
    %6 = arith.extui %5 : i1 to i32
    %c0_i32_3 = arith.constant 0 : i32
    %7 = arith.cmpi ne, %6, %c0_i32_3 : i32
    scf.if %7 {
      %cst_22 = arith.constant 0.000000e+00 : f32
      %23 = vector.broadcast %cst_22 : f32 to vector<16x16xf32>
      %c0_23 = arith.constant 0 : index
      %c0_24 = arith.constant 0 : index
      %24 = vector.load %arg12[%c0_23, %c0_24] : memref<16x16xf32, #tpu.memory_space<vmem>>, vector<16x16xf32>
      tpu.vector_store %arg12[%c0_23, %c0_24], %23 {strides = array<i32>} : memref<16x16xf32, #tpu.memory_space<vmem>>, vector<16x16xf32>,
      %cst_25 = arith.constant 0.000000e+00 : f32
      %25 = vector.broadcast %cst_25 : f32 to vector<16x16xf32>
      %c0_26 = arith.constant 0 : index
      %c0_27 = arith.constant 0 : index
      %26 = vector.load %arg13[%c0_26, %c0_27] : memref<16x16xf32, #tpu.memory_space<vmem>>, vector<16x16xf32>
      tpu.vector_store %arg13[%c0_26, %c0_27], %25 {strides = array<i32>} : memref<16x16xf32, #tpu.memory_space<vmem>>, vector<16x16xf32>,
    } else {
    }
    %c0 = arith.constant 0 : index
    %c0_4 = arith.constant 0 : index
    %8 = vector.load %arg12[%c0, %c0_4] : memref<16x16xf32, #tpu.memory_space<vmem>>, vector<16x16xf32>
    %c0_5 = arith.constant 0 : index
    %c0_6 = arith.constant 0 : index
    %9 = vector.load %arg7[%c0_5, %c0_6] : memref<16x16xbf16, #tpu.memory_space<vmem>>, vector<16x16xbf16>
    %c0_7 = arith.constant 0 : index
    %c0_8 = arith.constant 0 : index
    %10 = vector.load %arg9[%c0_7, %c0_8] : memref<16x16xf32, #tpu.memory_space<vmem>>, vector<16x16xf32>
    %cst = arith.constant dense<0.000000e+00> : vector<16x16xf32>
    %11 = tpu.matmul %9, %10, %cst {dimension_numbers = #tpu.dot_dimension_numbers<[1], [0], [0], [1], [0, 0, 1, 1], [], []>} : vector<16x16xbf16>, vector<16x16xf32>, vector<16x16xf32> -> vector<16x16xf32>
    %12 = arith.addf %8, %11 : vector<16x16xf32>
    %c0_9 = arith.constant 0 : index
    %c0_10 = arith.constant 0 : index
    %13 = vector.load %arg12[%c0_9, %c0_10] : memref<16x16xf32, #tpu.memory_space<vmem>>, vector<16x16xf32>
    tpu.vector_store %arg12[%c0_9, %c0_10], %12 {strides = array<i32>} : memref<16x16xf32, #tpu.memory_space<vmem>>, vector<16x16xf32>,
    %c0_11 = arith.constant 0 : index
    %c0_12 = arith.constant 0 : index
    %14 = vector.load %arg13[%c0_11, %c0_12] : memref<16x16xf32, #tpu.memory_space<vmem>>, vector<16x16xf32>
    %c0_13 = arith.constant 0 : index
    %c0_14 = arith.constant 0 : index
    %15 = vector.load %arg8[%c0_13, %c0_14] : memref<16x16xbf16, #tpu.memory_space<vmem>>, vector<16x16xbf16>
    %c0_15 = arith.constant 0 : index
    %c0_16 = arith.constant 0 : index
    %16 = vector.load %arg10[%c0_15, %c0_16] : memref<16x16xf32, #tpu.memory_space<vmem>>, vector<16x16xf32>
    %cst_17 = arith.constant dense<0.000000e+00> : vector<16x16xf32>
    %17 = tpu.matmul %15, %16, %cst_17 {dimension_numbers = #tpu.dot_dimension_numbers<[1], [0], [0], [1], [0, 0, 1, 1], [], []>} : vector<16x16xbf16>, vector<16x16xf32>, vector<16x16xf32> -> vector<16x16xf32>
    %18 = arith.addf %14, %17 : vector<16x16xf32>
    %c0_18 = arith.constant 0 : index
    %c0_19 = arith.constant 0 : index
    %19 = vector.load %arg13[%c0_18, %c0_19] : memref<16x16xf32, #tpu.memory_space<vmem>>, vector<16x16xf32>
    tpu.vector_store %arg13[%c0_18, %c0_19], %18 {strides = array<i32>} : memref<16x16xf32, #tpu.memory_space<vmem>>, vector<16x16xf32>,
    %c0_i32_20 = arith.constant 0 : i32
    %20 = arith.cmpi eq, %arg2, %c0_i32_20 : i32
    %21 = arith.extui %20 : i1 to i32
    %c0_i32_21 = arith.constant 0 : i32
    %22 = arith.cmpi ne, %21, %c0_i32_21 : i32
    scf.if %22 {
      %c0_22 = arith.constant 0 : index
      %c0_23 = arith.constant 0 : index
      %23 = vector.load %arg3[%c0_22, %c0_23] : memref<16x128xf32, #tpu.memory_space<vmem>>, vector<16x128xf32>
      %c0_24 = arith.constant 0 : index
      %c0_25 = arith.constant 0 : index
      %24 = vector.load %arg4[%c0_24, %c0_25] : memref<16x128xf32, #tpu.memory_space<vmem>>, vector<16x128xf32>
      %25 = arith.mulf %23, %23 : vector<16x128xf32>
      %cst_26 = arith.constant dense<0.000000e+00> : vector<16xf32>
      %26 = vector.multi_reduction <add>, %25, %cst_26 [1] : vector<16x128xf32> to vector<16xf32>
      %27 = vector.shape_cast %26 : vector<16xf32> to vector<16x1xf32>
      %28 = arith.mulf %24, %24 : vector<16x128xf32>
      %cst_27 = arith.constant dense<0.000000e+00> : vector<16xf32>
      %29 = vector.multi_reduction <add>, %28, %cst_27 [1] : vector<16x128xf32> to vector<16xf32>
      %30 = vector.shape_cast %29 : vector<16xf32> to vector<16x1xf32>
      %31 = tpu.transpose %24, [1, 0] : vector<16x128xf32> -> vector<128x16xf32>
      %cst_28 = arith.constant dense<0.000000e+00> : vector<16x16xf32>
      %32 = tpu.matmul %23, %31, %cst_28 {dimension_numbers = #tpu.dot_dimension_numbers<[1], [0], [0], [1], [0, 0, 1, 1], [], []>} : vector<16x128xf32>, vector<128x16xf32>, vector<16x16xf32> -> vector<16x16xf32>
      %33 = tpu.transpose %30, [1, 0] : vector<16x1xf32> -> vector<1x16xf32>
      %34 = vector.broadcast %27 : vector<16x1xf32> to vector<16x16xf32>
      %35 = vector.broadcast %33 : vector<1x16xf32> to vector<16x16xf32>
      %36 = arith.addf %34, %35 : vector<16x16xf32>
      %cst_29 = arith.constant 2.000000e+00 : f32
      %37 = vector.broadcast %cst_29 : f32 to vector<16x16xf32>
      %38 = arith.mulf %37, %32 : vector<16x16xf32>
      %39 = arith.subf %36, %38 : vector<16x16xf32>
      %cst_30 = arith.constant 0.000000e+00 : f32
      %40 = vector.broadcast %cst_30 : f32 to vector<16x16xf32>
      %41 = arith.maximumf %39, %40 : vector<16x16xf32>
      %42 = math.sqrt %41 : vector<16x16xf32>
      %c0_31 = arith.constant 0 : index
      %c0_32 = arith.constant 0 : index
      %43 = vector.load %arg5[%c0_31, %c0_32] : memref<16x1xf32, #tpu.memory_space<vmem>>, vector<16x1xf32>
      %44 = vector.broadcast %43 : vector<16x1xf32> to vector<16x16xf32>
      %45 = arith.mulf %42, %44 : vector<16x16xf32>
      %c0_33 = arith.constant 0 : index
      %c0_34 = arith.constant 0 : index
      %46 = vector.load %arg12[%c0_33, %c0_34] : memref<16x16xf32, #tpu.memory_space<vmem>>, vector<16x16xf32>
      %c0_35 = arith.constant 0 : index
      %c0_36 = arith.constant 0 : index
      %47 = vector.load %arg13[%c0_35, %c0_36] : memref<16x16xf32, #tpu.memory_space<vmem>>, vector<16x16xf32>
      %48 = tpu.transpose %47, [1, 0] : vector<16x16xf32> -> vector<16x16xf32>
      %49 = arith.addf %46, %48 : vector<16x16xf32>
      %cst_37 = arith.constant 1.000000e-01 : f32
      %50 = vector.broadcast %cst_37 : f32 to vector<16x16xf32>
      %51 = arith.mulf %49, %50 : vector<16x16xf32>
      %c0_38 = arith.constant 0 : index
      %c0_39 = arith.constant 0 : index
      %52 = vector.load %arg6[%c0_38, %c0_39] : memref<16x16xf32, #tpu.memory_space<vmem>>, vector<16x16xf32>
      %53 = arith.addf %52, %51 : vector<16x16xf32>
      %cst_40 = arith.constant 5.000000e-01 : f32
      %54 = vector.broadcast %cst_40 : f32 to vector<16x16xf32>
      %55 = arith.mulf %53, %54 : vector<16x16xf32>
      %56 = arith.mulf %45, %45 : vector<16x16xf32>
      %57 = arith.mulf %56, %55 : vector<16x16xf32>
      %cst_41 = arith.constant 1.000000e+00 : f32
      %58 = vector.broadcast %cst_41 : f32 to vector<16x16xf32>
      %59 = arith.subf %58, %45 : vector<16x16xf32>
      %cst_42 = arith.constant 0.000000e+00 : f32
      %60 = vector.broadcast %cst_42 : f32 to vector<16x16xf32>
      %61 = arith.maximumf %59, %60 : vector<16x16xf32>
      %62 = arith.mulf %61, %61 : vector<16x16xf32>
      %cst_43 = arith.constant 1.000000e+00 : f32
      %63 = vector.broadcast %cst_43 : f32 to vector<16x16xf32>
      %64 = arith.subf %63, %55 : vector<16x16xf32>
      %65 = arith.mulf %62, %64 : vector<16x16xf32>
      %66 = arith.addf %57, %65 : vector<16x16xf32>
      %67 = arith.cmpi eq, %arg0, %arg1 : i32
      %68 = arith.extui %67 : i1 to i32
      %c0_i32_44 = arith.constant 0 : i32
      %69 = arith.cmpi ne, %68, %c0_i32_44 : i32
      scf.if %69 {
        %76 = tpu.iota {dimensions = array<i32: 0>} : vector<16x16xi32>
        %77 = tpu.iota {dimensions = array<i32: 1>} : vector<16x16xi32>
        %c0_48 = arith.constant 0 : index
        %c0_49 = arith.constant 0 : index
        %78 = vector.load %arg14[%c0_48, %c0_49] : memref<1x1xf32, #tpu.memory_space<vmem>>, vector<1x1xf32>
        %79 = arith.cmpi ne, %76, %77 : vector<16x16xi32>
        %cst_50 = arith.constant 0.000000e+00 : f32
        %80 = vector.broadcast %cst_50 : f32 to vector<16x16xf32>
        %81 = arith.select %79, %66, %80 : vector<16x16xi1>, vector<16x16xf32>
        %82 = vector.shape_cast %81 : vector<16x16xf32> to vector<1x16x16xf32>
        %cst_51 = arith.constant dense<0.000000e+00> : vector<1xf32>
        %83 = vector.multi_reduction <add>, %82, %cst_51 [1, 2] : vector<1x16x16xf32> to vector<1xf32>
        %84 = vector.shape_cast %83 : vector<1xf32> to vector<1x1x1xf32>
        %85 = vector.extract %84[0, 0, 0] : f32 from vector<1x1x1xf32>
        %86 = vector.broadcast %85 : f32 to vector<1x1xf32>
        %87 = arith.addf %78, %86 : vector<1x1xf32>
        %c0_52 = arith.constant 0 : index
        %c0_53 = arith.constant 0 : index
        %88 = vector.load %arg14[%c0_52, %c0_53] : memref<1x1xf32, #tpu.memory_space<vmem>>, vector<1x1xf32>
        tpu.vector_store %arg14[%c0_52, %c0_53], %87 {strides = array<i32>} : memref<1x1xf32, #tpu.memory_space<vmem>>, vector<1x1xf32>,
      } else {
      }
      %70 = arith.cmpi ne, %arg0, %arg1 : i32
      %71 = arith.extui %70 : i1 to i32
      %c0_i32_45 = arith.constant 0 : i32
      %72 = arith.cmpi ne, %71, %c0_i32_45 : i32
      scf.if %72 {
        %c0_48 = arith.constant 0 : index
        %c0_49 = arith.constant 0 : index
        %76 = vector.load %arg14[%c0_48, %c0_49] : memref<1x1xf32, #tpu.memory_space<vmem>>, vector<1x1xf32>
        %77 = vector.shape_cast %66 : vector<16x16xf32> to vector<1x16x16xf32>
        %cst_50 = arith.constant dense<0.000000e+00> : vector<1xf32>
        %78 = vector.multi_reduction <add>, %77, %cst_50 [1, 2] : vector<1x16x16xf32> to vector<1xf32>
        %79 = vector.shape_cast %78 : vector<1xf32> to vector<1x1x1xf32>
        %80 = vector.extract %79[0, 0, 0] : f32 from vector<1x1x1xf32>
        %81 = vector.broadcast %80 : f32 to vector<1x1xf32>
        %82 = arith.addf %76, %81 : vector<1x1xf32>
        %c0_51 = arith.constant 0 : index
        %c0_52 = arith.constant 0 : index
        %83 = vector.load %arg14[%c0_51, %c0_52] : memref<1x1xf32, #tpu.memory_space<vmem>>, vector<1x1xf32>
        tpu.vector_store %arg14[%c0_51, %c0_52], %82 {strides = array<i32>} : memref<1x1xf32, #tpu.memory_space<vmem>>, vector<1x1xf32>,
      } else {
      }
      %c0_i32_46 = arith.constant 0 : i32
      %73 = arith.cmpi eq, %arg1, %c0_i32_46 : i32
      %74 = arith.extui %73 : i1 to i32
      %c0_i32_47 = arith.constant 0 : i32
      %75 = arith.cmpi ne, %74, %c0_i32_47 : i32
      scf.if %75 {
        %c0_48 = arith.constant 0 : index
        %c0_49 = arith.constant 0 : index
        %76 = vector.load %arg14[%c0_48, %c0_49] : memref<1x1xf32, #tpu.memory_space<vmem>>, vector<1x1xf32>
        %77 = vector.shape_cast %76 : vector<1x1xf32> to vector<1x1x1xf32>
        %78 = vector.shape_cast %77 : vector<1x1x1xf32> to vector<1x1x1xf32>
        %79 = vector.broadcast %78 : vector<1x1x1xf32> to vector<1x8x128xf32>
        %c0_50 = arith.constant 0 : index
        %c0_51 = arith.constant 0 : index
        %c0_52 = arith.constant 0 : index
        %80 = vector.load %arg11[%c0_50, %c0_51, %c0_52] : memref<1x8x128xf32, #tpu.memory_space<vmem>>, vector<1x8x128xf32>
        tpu.vector_store %arg11[%c0_50, %c0_51, %c0_52], %79 {strides = array<i32>} : memref<1x8x128xf32, #tpu.memory_space<vmem>>, vector<1x8x128xf32>,
      } else {
      }
    } else {
    }
    return
  }
  func.func @transform_0(%arg0: i32, %arg1: i32, %arg2: i32) -> (i32, i32) {
    %c0_i32 = arith.constant 0 : i32
    %c0_i32_0 = arith.constant 0 : i32
    return %arg0, %c0_i32 : i32, i32
  }
  func.func @transform_1(%arg0: i32, %arg1: i32, %arg2: i32) -> (i32, i32) {
    %c0_i32 = arith.constant 0 : i32
    %c0_i32_0 = arith.constant 0 : i32
    return %arg1, %c0_i32 : i32, i32
  }
  func.func @transform_2(%arg0: i32, %arg1: i32, %arg2: i32) -> (i32, i32) {
    %c0_i32 = arith.constant 0 : i32
    %c0_i32_0 = arith.constant 0 : i32
    return %arg0, %c0_i32 : i32, i32
  }
  func.func @transform_3(%arg0: i32, %arg1: i32, %arg2: i32) -> (i32, i32) {
    %c0_i32 = arith.constant 0 : i32
    return %arg0, %arg1 : i32, i32
  }
  func.func @transform_4(%arg0: i32, %arg1: i32, %arg2: i32) -> (i32, i32) {
    %c0_i32 = arith.constant 0 : i32
    return %arg0, %arg2 : i32, i32
  }
  func.func @transform_5(%arg0: i32, %arg1: i32, %arg2: i32) -> (i32, i32) {
    %c0_i32 = arith.constant 0 : i32
    return %arg1, %arg2 : i32, i32
  }
  func.func @transform_6(%arg0: i32, %arg1: i32, %arg2: i32) -> (i32, i32) {
    %c0_i32 = arith.constant 0 : i32
    return %arg2, %arg1 : i32, i32
  }
  func.func @transform_7(%arg0: i32, %arg1: i32, %arg2: i32) -> (i32, i32) {
    %c0_i32 = arith.constant 0 : i32
    return %arg2, %arg0 : i32, i32
  }
  func.func @transform_8(%arg0: i32, %arg1: i32, %arg2: i32) -> (i32, i32, i32) {
    %c0_i32 = arith.constant 0 : i32
    %c0_i32_0 = arith.constant 0 : i32
    %c0_i32_1 = arith.constant 0 : i32
    return %arg0, %c0_i32, %c0_i32_0 : i32, i32, i32
  }
}

</mosaic_0001>

<llo_original>
// kernel: sg_loss.3
$region0: #{sg_loss.3}
  #allocation0 [shape = 'u32[]', space=smem, size = 0x4, offset = 0x4, fixed_abs, tag = 'smem constant byte address 0x4 - core index']
  #allocation1 [shape = 'u32[72,128]{1,0:T(1,128)}', space=vmem, size = 0x9000, scoped, tag = 'internal scratch']
  %s0 = inlined_call_operand.vmem [shape: f32[16,128], index: 0, kind: input, shape index: {}, may-alias: {0,1}]
  %s1 = inlined_call_operand.vmem [shape: f32[16,128], index: 1, kind: input, shape index: {}, may-alias: {0,1}]
  %s2 = inlined_call_operand.vmem [shape: f32[16,128], index: 2, kind: input, shape index: {}, may-alias: {2,3}]
  %s3 = inlined_call_operand.vmem [shape: f32[16,128], index: 3, kind: input, shape index: {}, may-alias: {2,3}]
  %s4 = inlined_call_operand.vmem [shape: f32[16,16], index: 4, kind: output, shape index: {0}]
  %s5 = inlined_call_operand.vmem [shape: f32[16,1], index: 5, kind: output, shape index: {1}]
  %6 = xla_tuple %s4, %s5
  %s7 = sld [smem:[#allocation0]]
  $region38: #{sg_loss.3} parent=0
    _
  %s9 = ssub.s32 1, %s7
  %s10 = scalar_select 0, %s9, %s7
  // Predicated region
  $region2: #{sg_loss.3} parent=0 // pred_check
    _
  $region3: #{sg_loss.3} parent=0 // pred_check_branch
    %12 = sbr.rel (0) target = $region5
  $region4: #{sg_loss.3} parent=0 // pred_region
    _
  $region5: #{sg_loss.3} parent=0 // pred_fallthru
    _
  // Predicated region
  $region6: #{sg_loss.3} parent=0 // pred_check
    _
  $region7: #{sg_loss.3} parent=0 // pred_check_branch
    %14 = sbr.rel (0) target = $region9
  $region8: #{sg_loss.3} parent=0 // pred_region
    _
  $region9: #{sg_loss.3} parent=0 // pred_fallthru
    _
  // Predicated region
  $region10: #{sg_loss.3} parent=0 // pred_check
    _
  $region11: #{sg_loss.3} parent=0 // pred_check_branch
    %16 = sbr.rel (0) target = $region13
  $region12: #{sg_loss.3} parent=0 // pred_region
    _
  $region13: #{sg_loss.3} parent=0 // pred_fallthru
    _
  // Predicated region
  $region14: #{sg_loss.3} parent=0 // pred_check
    _
  $region15: #{sg_loss.3} parent=0 // pred_check_branch
    %18 = sbr.rel (0) target = $region17
  $region16: #{sg_loss.3} parent=0 // pred_region
    _
  $region17: #{sg_loss.3} parent=0 // pred_fallthru
    _
  %v19 = vld [vmem:[%s0] sm:$0xff]
  %v20 = vld [vmem:[%s0 + $0x8] sm:$0xff]
  %v21 = vld [vmem:[%s1] sm:$0xff]
  %v22 = vld [vmem:[%s1 + $0x8] sm:$0xff]
  %v23 = vmul.f32 %v19, %v19
  %v24 = vmul.f32 %v20, %v20
  %25 = vadd.xlane.f32.xlu0 %v23
  %v26 = vpop.xlane.xlu0 %25
  %27 = vadd.xlane.f32.xlu0 %v24
  %v28 = vpop.xlane.xlu0 %27
  %v29 = vrsqrt.pop %v26
  %v30 = vmul.f32 %v29, %v26
  %v31 = vmul.f32 %v30, %v29
  %v32 = vmul.f32 0.5, %v31
  %v33 = vsub.f32 1.5, %v32
  %v34 = vmul.f32 %v29, %v33
  %v35 = vmul.f32 %v26, %v34
  %vm36 = vcmp.eq.f32.partialorder %v26, inf
  %v37 = vsel %vm36, %v26, %v35
  %vm38 = vcmp.eq.f32.partialorder %v26, 0.0
  %v39 = vand.u32 %v26, 2147483648
  %v40 = vsel %vm38, %v39, %v37
  %v41 = vrsqrt.pop %v28
  %v42 = vmul.f32 %v41, %v28
  %v43 = vmul.f32 %v42, %v41
  %v44 = vmul.f32 0.5, %v43
  %v45 = vsub.f32 1.5, %v44
  %v46 = vmul.f32 %v41, %v45
  %v47 = vmul.f32 %v28, %v46
  %vm48 = vcmp.eq.f32.partialorder %v28, inf
  %v49 = vsel %vm48, %v28, %v47
  %vm50 = vcmp.eq.f32.partialorder %v28, 0.0
  %v51 = vand.u32 %v28, 2147483648
  %v52 = vsel %vm50, %v51, %v49
  %v53 = vmax.f32 %v40, 1e-12
  %v54 = vmax.f32 %v52, 1e-12
  %v55 = vrcp.pop %v53
  %v56 = vmul.f32 %v53, %v55
  %v57 = vsub.f32 1.0, %v56
  %v58 = vmul.f32 %v55, %v57
  %v59 = vadd.f32 %v55, %v58
  %vm60 = vweird.f32 %v53
  %vm61 = vweird.f32 %v55
  %vm62 = vmor %vm60, %vm61
  %v63 = vsel %vm62, %v55, %v59
  %v64 = vand.u32 2147483647, %v53
  %vm65 = vcmp.eq.f32.partialorder %v64, 8.507059e+37
  %v66 = vand.u32 %v53, 2147483648
  %v67 = vor.u32 1.1754944e-38, %v66
  %v68 = vsel %vm65, %v67, %v63
  %v69 = vmul.f32 %v19, %v68
  %v70 = vrcp.pop %v54
  %v71 = vmul.f32 %v54, %v70
  %v72 = vsub.f32 1.0, %v71
  %v73 = vmul.f32 %v70, %v72
  %v74 = vadd.f32 %v70, %v73
  %vm75 = vweird.f32 %v54
  %vm76 = vweird.f32 %v70
  %vm77 = vmor %vm75, %vm76
  %v78 = vsel %vm77, %v70, %v74
  %v79 = vand.u32 2147483647, %v54
  %vm80 = vcmp.eq.f32.partialorder %v79, 8.507059e+37
  %v81 = vand.u32 %v54, 2147483648
  %v82 = vor.u32 1.1754944e-38, %v81
  %v83 = vsel %vm80, %v82, %v78
  %v84 = vmul.f32 %v20, %v83
  %v85 = vmul.f32 %v21, %v21
  %v86 = vmul.f32 %v22, %v22
  %87 = vadd.xlane.f32.xlu0 %v85
  %v88 = vpop.xlane.xlu0 %87
  %89 = vadd.xlane.f32.xlu0 %v86
  %v90 = vpop.xlane.xlu0 %89
  %v91 = vrsqrt.pop %v88
  %v92 = vmul.f32 %v91, %v88
  %v93 = vmul.f32 %v92, %v91
  %v94 = vmul.f32 0.5, %v93
  %v95 = vsub.f32 1.5, %v94
  %v96 = vmul.f32 %v91, %v95
  %v97 = vmul.f32 %v88, %v96
  %vm98 = vcmp.eq.f32.partialorder %v88, inf
  %v99 = vsel %vm98, %v88, %v97
  %vm100 = vcmp.eq.f32.partialorder %v88, 0.0
  %v101 = vand.u32 %v88, 2147483648
  %v102 = vsel %vm100, %v101, %v99
  %v103 = vrsqrt.pop %v90
  %v104 = vmul.f32 %v103, %v90
  %v105 = vmul.f32 %v104, %v103
  %v106 = vmul.f32 0.5, %v105
  %v107 = vsub.f32 1.5, %v106
  %v108 = vmul.f32 %v103, %v107
  %v109 = vmul.f32 %v90, %v108
  %vm110 = vcmp.eq.f32.partialorder %v90, inf
  %v111 = vsel %vm110, %v90, %v109
  %vm112 = vcmp.eq.f32.partialorder %v90, 0.0
  %v113 = vand.u32 %v90, 2147483648
  %v114 = vsel %vm112, %v113, %v111
  %v115 = vmax.f32 %v102, 1e-12
  %v116 = vmax.f32 %v114, 1e-12
  %v117 = vrcp.pop %v115
  %v118 = vmul.f32 %v115, %v117
  %v119 = vsub.f32 1.0, %v118
  %v120 = vmul.f32 %v117, %v119
  %v121 = vadd.f32 %v117, %v120
  %vm122 = vweird.f32 %v115
  %vm123 = vweird.f32 %v117
  %vm124 = vmor %vm122, %vm123
  %v125 = vsel %vm124, %v117, %v121
  %v126 = vand.u32 2147483647, %v115
  %vm127 = vcmp.eq.f32.partialorder %v126, 8.507059e+37
  %v128 = vand.u32 %v115, 2147483648
  %v129 = vor.u32 1.1754944e-38, %v128
  %v130 = vsel %vm127, %v129, %v125
  %v131 = vmul.f32 %v21, %v130
  %v132 = vrcp.pop %v116
  %v133 = vmul.f32 %v116, %v132
  %v134 = vsub.f32 1.0, %v133
  %v135 = vmul.f32 %v132, %v134
  %v136 = vadd.f32 %v132, %v135
  %vm137 = vweird.f32 %v116
  %vm138 = vweird.f32 %v132
  %vm139 = vmor %vm137, %vm138
  %v140 = vsel %vm139, %v132, %v136
  %v141 = vand.u32 2147483647, %v116
  %vm142 = vcmp.eq.f32.partialorder %v141, 8.507059e+37
  %v143 = vand.u32 %v116, 2147483648
  %v144 = vor.u32 1.1754944e-38, %v143
  %v145 = vsel %vm142, %v144, %v140
  %v146 = vmul.f32 %v22, %v145
  %v147 = vmul.f32 %v69, %v69
  %v148 = vmul.f32 %v84, %v84
  %149 = vadd.xlane.f32.xlu0 %v147
  %v150 = vpop.xlane.xlu0 %149
  %151 = vadd.xlane.f32.xlu0 %v148
  %v152 = vpop.xlane.xlu0 %151
  %v153 = vmul.f32 %v131, %v131
  %v154 = vmul.f32 %v146, %v146
  %155 = vadd.xlane.f32.xlu0 %v153
  %v156 = vpop.xlane.xlu0 %155
  %157 = vadd.xlane.f32.xlu0 %v154
  %v158 = vpop.xlane.xlu0 %157
  %159 = vmatpush.xpose.msra.mxu0 0.0
  %160 = vmatpush.xpose.msra.mxu0 0.0
  %161 = vmatpush.xpose.msra.mxu0 0.0
  %162 = vmatpush.xpose.msra.mxu0 0.0
  %163 = vmatpush.xpose.msra.mxu0 0.0
  %164 = vmatpush.xpose.msra.mxu0 0.0
  %165 = vmatpush.xpose.msra.mxu0 0.0
  %166 = vmatpush.xpose.msra.mxu0 0.0
  %167 = vmatpush.xpose.msra.mxu0 0.0
  %168 = vmatpush.xpose.msra.mxu0 0.0
  %169 = vmatpush.xpose.msra.mxu0 0.0
  %170 = vmatpush.xpose.msra.mxu0 0.0
  %171 = vmatpush.xpose.msra.mxu0 0.0
  %172 = vmatpush.xpose.msra.mxu0 0.0
  %173 = vmatpush.xpose.msra.mxu0 %v146
  %174 = vmatpush.xpose.msra.mxu0 %v131
  %175 = vmatmul.f32.gmra.mxu0 %v69
  %v176 = vpop.f32.mrf.mxu0
  %v177 = vadd.f32 0.0, %v176
  %178 = vmatmul.f32.gmra.mxu0 %v84
  %v179 = vpop.f32.mrf.mxu0
  %v180 = vadd.f32 0.0, %v179
  %181 = vdwg.mxu0
  %182 = vxpose.xlu0.b32.start [1/16] %v156, 128
  %183 = vxpose.xlu0.b32.cont [2/16] %v158, 128
  %184 = vxpose.xlu0.b32.cont [3/16] 0.0, 128
  %185 = vxpose.xlu0.b32.cont [4/16] 0.0, 128
  %186 = vxpose.xlu0.b32.cont [5/16] 0.0, 128
  %187 = vxpose.xlu0.b32.cont [6/16] 0.0, 128
  %188 = vxpose.xlu0.b32.cont [7/16] 0.0, 128
  %189 = vxpose.xlu0.b32.cont [8/16] 0.0, 128
  %190 = vxpose.xlu0.b32.cont [9/16] 0.0, 128
  %191 = vxpose.xlu0.b32.cont [10/16] 0.0, 128
  %192 = vxpose.xlu0.b32.cont [11/16] 0.0, 128
  %193 = vxpose.xlu0.b32.cont [12/16] 0.0, 128
  %194 = vxpose.xlu0.b32.cont [13/16] 0.0, 128
  %195 = vxpose.xlu0.b32.cont [14/16] 0.0, 128
  %196 = vxpose.xlu0.b32.cont [15/16] 0.0, 128
  %197 = vxpose.xlu0.b32.end [16/16] 0.0, 128
  %v198 = vpop.trf.xlu0
  %v199 = vpop.trf.xlu0
  %v200 = vpop.trf.xlu0
  %v201 = vpop.trf.xlu0
  %v202 = vpop.trf.xlu0
  %v203 = vpop.trf.xlu0
  %v204 = vpop.trf.xlu0
  %v205 = vpop.trf.xlu0
  %v206 = vpop.trf.xlu0
  %v207 = vpop.trf.xlu0
  %v208 = vpop.trf.xlu0
  %v209 = vpop.trf.xlu0
  %v210 = vpop.trf.xlu0
  %v211 = vpop.trf.xlu0
  %v212 = vpop.trf.xlu0
  %v213 = vpop.trf.xlu0
  %v214 = vperm.slane %v198, 0
  %v215 = vadd.f32 %v150, %v214
  %v216 = vadd.f32 %v152, %v214
  %v217 = vmul.f32 %v177, 2.0
  %v218 = vmul.f32 %v180, 2.0
  %v219 = vsub.f32 %v215, %v217
  %v220 = vsub.f32 %v216, %v218
  %v221 = vmax.f32 %v219, 0.0
  %v222 = vmax.f32 %v220, 0.0
  %v223 = vsub.f32 0.0, %v221
  %v224 = vsub.f32 0.0, %v222
  %v225 = vmul.f32 %v223, 1.442695
  %v226 = vpow.pop %v225
  %v227 = vmul.f32 %v224, 1.442695
  %v228 = vpow.pop %v227
  %vm229 = vcmask 130048
  %230 = vst.msk [vmem:[%s4] sm:$0xff] %vm229, %v226
  %231 = vst.msk [vmem:[%s4 + $0x8] sm:$0xff] %vm229, %v228
  %v232 = vld [vmem:[%s2] sm:$0xff]
  %v233 = vld [vmem:[%s2 + $0x8] sm:$0xff]
  %v234 = vld [vmem:[%s3] sm:$0xff]
  %v235 = vld [vmem:[%s3 + $0x8] sm:$0xff]
  %v236 = vmul.f32 %v232, %v232
  %v237 = vmul.f32 %v233, %v233
  %238 = vadd.xlane.f32.xlu0 %v236
  %v239 = vpop.xlane.xlu0 %238
  %240 = vadd.xlane.f32.xlu0 %v237
  %v241 = vpop.xlane.xlu0 %240
  %v242 = vmul.f32 %v234, %v234
  %v243 = vmul.f32 %v235, %v235
  %244 = vadd.xlane.f32.xlu0 %v242
  %v245 = vpop.xlane.xlu0 %244
  %246 = vadd.xlane.f32.xlu0 %v243
  %v247 = vpop.xlane.xlu0 %246
  %248 = vmatpush.xpose.msra.mxu0 0.0
  %249 = vmatpush.xpose.msra.mxu0 0.0
  %250 = vmatpush.xpose.msra.mxu0 0.0
  %251 = vmatpush.xpose.msra.mxu0 0.0
  %252 = vmatpush.xpose.msra.mxu0 0.0
  %253 = vmatpush.xpose.msra.mxu0 0.0
  %254 = vmatpush.xpose.msra.mxu0 0.0
  %255 = vmatpush.xpose.msra.mxu0 0.0
  %256 = vmatpush.xpose.msra.mxu0 0.0
  %257 = vmatpush.xpose.msra.mxu0 0.0
  %258 = vmatpush.xpose.msra.mxu0 0.0
  %259 = vmatpush.xpose.msra.mxu0 0.0
  %260 = vmatpush.xpose.msra.mxu0 0.0
  %261 = vmatpush.xpose.msra.mxu0 0.0
  %262 = vmatpush.xpose.msra.mxu0 %v235
  %263 = vmatpush.xpose.msra.mxu0 %v234
  %264 = vmatmul.f32.gmra.mxu0 %v232
  %v265 = vpop.f32.mrf.mxu0
  %v266 = vadd.f32 0.0, %v265
  %267 = vmatmul.f32.gmra.mxu0 %v233
  %v268 = vpop.f32.mrf.mxu0
  %v269 = vadd.f32 0.0, %v268
  %270 = vdwg.mxu0
  %271 = vxpose.xlu0.b32.start [1/16] %v245, 128
  %272 = vxpose.xlu0.b32.cont [2/16] %v247, 128
  %273 = vxpose.xlu0.b32.cont [3/16] 0.0, 128
  %274 = vxpose.xlu0.b32.cont [4/16] 0.0, 128
  %275 = vxpose.xlu0.b32.cont [5/16] 0.0, 128
  %276 = vxpose.xlu0.b32.cont [6/16] 0.0, 128
  %277 = vxpose.xlu0.b32.cont [7/16] 0.0, 128
  %278 = vxpose.xlu0.b32.cont [8/16] 0.0, 128
  %279 = vxpose.xlu0.b32.cont [9/16] 0.0, 128
  %280 = vxpose.xlu0.b32.cont [10/16] 0.0, 128
  %281 = vxpose.xlu0.b32.cont [11/16] 0.0, 128
  %282 = vxpose.xlu0.b32.cont [12/16] 0.0, 128
  %283 = vxpose.xlu0.b32.cont [13/16] 0.0, 128
  %284 = vxpose.xlu0.b32.cont [14/16] 0.0, 128
  %285 = vxpose.xlu0.b32.cont [15/16] 0.0, 128
  %286 = vxpose.xlu0.b32.end [16/16] 0.0, 128
  %v287 = vpop.trf.xlu0
  %v288 = vpop.trf.xlu0
  %v289 = vpop.trf.xlu0
  %v290 = vpop.trf.xlu0
  %v291 = vpop.trf.xlu0
  %v292 = vpop.trf.xlu0
  %v293 = vpop.trf.xlu0
  %v294 = vpop.trf.xlu0
  %v295 = vpop.trf.xlu0
  %v296 = vpop.trf.xlu0
  %v297 = vpop.trf.xlu0
  %v298 = vpop.trf.xlu0
  %v299 = vpop.trf.xlu0
  %v300 = vpop.trf.xlu0
  %v301 = vpop.trf.xlu0
  %v302 = vpop.trf.xlu0
  %v303 = vperm.slane %v287, 0
  %v304 = vadd.f32 %v239, %v303
  %v305 = vadd.f32 %v241, %v303
  %v306 = vmul.f32 %v266, 2.0
  %v307 = vmul.f32 %v269, 2.0
  %v308 = vsub.f32 %v304, %v306
  %v309 = vsub.f32 %v305, %v307
  %v310 = vmax.f32 %v308, 0.0
  %v311 = vmax.f32 %v309, 0.0
  %v312 = vrsqrt.pop %v310
  %v313 = vmul.f32 %v312, %v310
  %v314 = vmul.f32 %v313, %v312
  %v315 = vmul.f32 0.5, %v314
  %v316 = vsub.f32 1.5, %v315
  %v317 = vmul.f32 %v312, %v316
  %v318 = vmul.f32 %v310, %v317
  %vm319 = vcmp.eq.f32.partialorder %v310, inf
  %v320 = vsel %vm319, %v310, %v318
  %vm321 = vcmp.eq.f32.partialorder %v310, 0.0
  %v322 = vand.u32 %v310, 2147483648
  %v323 = vsel %vm321, %v322, %v320
  %v324 = vrsqrt.pop %v311
  %v325 = vmul.f32 %v324, %v311
  %v326 = vmul.f32 %v325, %v324
  %v327 = vmul.f32 0.5, %v326
  %v328 = vsub.f32 1.5, %v327
  %v329 = vmul.f32 %v324, %v328
  %v330 = vmul.f32 %v311, %v329
  %vm331 = vcmp.eq.f32.partialorder %v311, inf
  %v332 = vsel %vm331, %v311, %v330
  %vm333 = vcmp.eq.f32.partialorder %v311, 0.0
  %v334 = vand.u32 %v311, 2147483648
  %v335 = vsel %vm333, %v334, %v332
  %p336 = scmp.eq.s32.totalorder 0, 0
  // Predicated region
  $region18: #{sg_loss.3} parent=0 // pred_check
    %p337 = pneg %p336
  $region19: #{sg_loss.3} parent=0 // pred_check_branch
    %339 = sbr.rel (%p337) target = $region21
  $region20: #{sg_loss.3} parent=0 // pred_region
    %vm340 = vcmask 7168
    %341 = vst.msk [vmem:[%s5] sm:$0xff] %vm340, 0.0
    %342 = vst.msk [vmem:[%s5 + $0x8] sm:$0xff] %vm340, 0.0
  $region21: #{sg_loss.3} parent=0 // pred_fallthru
    _
  %v343 = vld [vmem:[%s5] sm:$0xff]
  %v344 = vld [vmem:[%s5 + $0x8] sm:$0xff]
  %v345 = vsel %vm229, %v323, 0.0
  %346 = vadd.xlane.f32.xlu0 %v345
  %v347 = vpop.xlane.xlu0 %346
  %v348 = vsel %vm229, %v335, 0.0
  %349 = vadd.xlane.f32.xlu0 %v348
  %v350 = vpop.xlane.xlu0 %349
  %v351 = vadd.f32 %v343, %v347
  %v352 = vadd.f32 %v344, %v350
  %vm353 = vcmask 7168
  %354 = vst.msk [vmem:[%s5] sm:$0xff] %vm353, %v351
  %355 = vst.msk [vmem:[%s5 + $0x8] sm:$0xff] %vm353, %v352
  // Predicated region
  $region22: #{sg_loss.3} parent=0 // pred_check
    _
  $region23: #{sg_loss.3} parent=0 // pred_check_branch
    %357 = sbr.rel (0) target = $region25
  $region24: #{sg_loss.3} parent=0 // pred_region
    _
  $region25: #{sg_loss.3} parent=0 // pred_fallthru
    _
  // Predicated region
  $region26: #{sg_loss.3} parent=0 // pred_check
    _
  $region27: #{sg_loss.3} parent=0 // pred_check_branch
    %359 = sbr.rel (0) target = $region29
  $region28: #{sg_loss.3} parent=0 // pred_region
    _
  $region29: #{sg_loss.3} parent=0 // pred_fallthru
    _
  // Predicated region
  $region30: #{sg_loss.3} parent=0 // pred_check
    _
  $region31: #{sg_loss.3} parent=0 // pred_check_branch
    %361 = sbr.rel (0) target = $region33
  $region32: #{sg_loss.3} parent=0 // pred_region
    _
  $region33: #{sg_loss.3} parent=0 // pred_fallthru
    _
  // Predicated region
  $region34: #{sg_loss.3} parent=0 // pred_check
    _
  $region35: #{sg_loss.3} parent=0 // pred_check_branch
    %363 = sbr.rel (0) target = $region37
  $region36: #{sg_loss.3} parent=0 // pred_region
    _
  $region37: #{sg_loss.3} parent=0 // pred_fallthru
    _

// kernel: sg_loss.4
$region0: #{sg_loss.4}
  #allocation0 [shape = 'u32[]', space=smem, size = 0x4, offset = 0x4, fixed_abs, tag = 'smem constant byte address 0x4 - core index']
  #allocation1 [shape = 'u32[72,128]{1,0:T(1,128)}', space=vmem, size = 0x9000, scoped, tag = 'internal scratch']
  #allocation2 [shape = 'f32[16,16]{1,0:T(8,128)}', space=vmem, size = 0x2000, scoped, tag = 'scratch operand']
  %s0 = inlined_call_operand.vmem [shape: bf16[16,16], index: 0, kind: input, shape index: {}, may-alias: {0,1,2}]
  %s1 = inlined_call_operand.vmem [shape: bf16[16,16], index: 1, kind: input, shape index: {}, may-alias: {0,1,2}]
  %s2 = inlined_call_operand.vmem [shape: bf16[16,16], index: 2, kind: input, shape index: {}, may-alias: {0,1,2}]
  %s3 = inlined_call_operand.vmem [shape: f32[16,1], index: 3, kind: input, shape index: {}]
  %s4 = inlined_call_operand.vmem [shape: f32[16,16], index: 4, kind: output, shape index: {}]
  %s5 = sld [smem:[#allocation0]]
  $region34: #{sg_loss.4} parent=0
    _
  %s7 = ssub.s32 1, %s5
  %s8 = scalar_select 0, %s7, %s5
  // Predicated region
  $region2: #{sg_loss.4} parent=0 // pred_check
    _
  $region3: #{sg_loss.4} parent=0 // pred_check_branch
    %10 = sbr.rel (0) target = $region5
  $region4: #{sg_loss.4} parent=0 // pred_region
    _
  $region5: #{sg_loss.4} parent=0 // pred_fallthru
    _
  // Predicated region
  $region6: #{sg_loss.4} parent=0 // pred_check
    _
  $region7: #{sg_loss.4} parent=0 // pred_check_branch
    %12 = sbr.rel (0) target = $region9
  $region8: #{sg_loss.4} parent=0 // pred_region
    _
  $region9: #{sg_loss.4} parent=0 // pred_fallthru
    _
  // Predicated region
  $region10: #{sg_loss.4} parent=0 // pred_check
    _
  $region11: #{sg_loss.4} parent=0 // pred_check_branch
    %14 = sbr.rel (0) target = $region13
  $region12: #{sg_loss.4} parent=0 // pred_region
    _
  $region13: #{sg_loss.4} parent=0 // pred_fallthru
    _
  // Predicated region
  $region14: #{sg_loss.4} parent=0 // pred_check
    _
  $region15: #{sg_loss.4} parent=0 // pred_check_branch
    %16 = sbr.rel (0) target = $region17
  $region16: #{sg_loss.4} parent=0 // pred_region
    _
  $region17: #{sg_loss.4} parent=0 // pred_fallthru
    _
  %p18 = scmp.eq.s32.totalorder 0, 0
  // Predicated region
  $region18: #{sg_loss.4} parent=0 // pred_check
    %p19 = pneg %p18
  $region19: #{sg_loss.4} parent=0 // pred_check_branch
    %21 = sbr.rel (%p19) target = $region21
  $region20: #{sg_loss.4} parent=0 // pred_region
    %vm22 = vcmask 130048
    %23 = vst.msk [vmem:[#allocation2] sm:$0xff] %vm22, 0.0
    %24 = vst.msk [vmem:[#allocation2 + $0x8] sm:$0xff] %vm22, 0.0
  $region21: #{sg_loss.4} parent=0 // pred_fallthru
    _
  %v25 = vld [vmem:[#allocation2] sm:$0xff]
  %v26 = vld [vmem:[#allocation2 + $0x8] sm:$0xff]
  %v27 = vld [vmem:[%s0] sm:$0xf]
  %v28 = vld [vmem:[%s0 + $0x4] sm:$0xf]
  %v29 = vld [vmem:[%s1] sm:$0xf]
  %v30 = vld [vmem:[%s1 + $0x4] sm:$0xf]
  %v33 = vunpack.c.l.b16 %v27
  %v34 = vunpack.c.l.b16 %v28
  %v35 = vpack.c.b16 %v34, %v33
  %v38 = vunpack.c.l.b16 %v29
  %v39 = vunpack.c.l.b16 %v30
  %v40 = vpack.c.b16 %v39, %v38
  %vm42 = vcmask 130048
  %v44 = vsel %vm42, %v35, 0
  %46 = vmatpush.bf16.msra.mxu0 0
  %47 = vmatpush.bf16.msra.mxu0 0
  %48 = vmatpush.bf16.msra.mxu0 0
  %49 = vmatpush.bf16.msra.mxu0 0
  %50 = vmatpush.bf16.msra.mxu0 0
  %51 = vmatpush.bf16.msra.mxu0 0
  %52 = vmatpush.bf16.msra.mxu0 0
  %53 = vmatpush.bf16.msra.mxu0 %v40
  %54 = vmatmul.bf16.gmra.mxu0 %v44
  %v55 = vpop.f32.mrf.mxu0
  %v56 = vadd.f32 0.0, %v55
  %v57 = vpop.f32.mrf.mxu0
  %v58 = vadd.f32 0.0, %v57
  %59 = vdwg.mxu0
  %v60 = vadd.f32 %v25, %v56
  %v61 = vadd.f32 %v26, %v58
  %62 = vst.msk [vmem:[#allocation2] sm:$0xff] %vm42, %v60
  %63 = vst.msk [vmem:[#allocation2 + $0x8] sm:$0xff] %vm42, %v61
  // Predicated region
  $region22: #{sg_loss.4} parent=0 // pred_check
    %p64 = pneg %p18
  $region23: #{sg_loss.4} parent=0 // pred_check_branch
    %66 = sbr.rel (%p64) target = $region25
  $region24: #{sg_loss.4} parent=0 // pred_region
    %v67 = vld [vmem:[%s2] sm:$0xf]
    %v68 = vld [vmem:[%s2 + $0x4] sm:$0xf]
    %v69 = vunpack.c.l.bf16 %v67
    %v70 = vunpack.c.l.bf16 %v68
    %v71 = vld [vmem:[#allocation2] sm:$0xff]
    %v72 = vld [vmem:[#allocation2 + $0x8] sm:$0xff]
    %v73 = vmul.f32 %v69, %v71
    %v74 = vmul.f32 %v70, %v72
    %v75 = vld [vmem:[%s3] sm:$0xff]
    %v76 = vld [vmem:[%s3 + $0x8] sm:$0xff]
    %78 = vset.pattern.permute.xlu0 0
    %79 = vperm.xlu0 %78, %v75
    %v80 = vpop.permute.xlu0 %79
    %83 = vset.pattern.permute.xlu0 0
    %84 = vperm.xlu0 %83, %v76
    %v85 = vpop.permute.xlu0 %84
    %v87 = vmul.f32 %v73, %v80
    %v88 = vmul.f32 %v74, %v85
    %89 = vst.msk [vmem:[%s4] sm:$0xff] %vm42, %v87
    %90 = vst.msk [vmem:[%s4 + $0x8] sm:$0xff] %vm42, %v88
  $region25: #{sg_loss.4} parent=0 // pred_fallthru
    _
  // Predicated region
  $region26: #{sg_loss.4} parent=0 // pred_check
    _
  $region27: #{sg_loss.4} parent=0 // pred_check_branch
    %92 = sbr.rel (0) target = $region29
  $region28: #{sg_loss.4} parent=0 // pred_region
    _
  $region29: #{sg_loss.4} parent=0 // pred_fallthru
    _
  // Predicated region
  $region30: #{sg_loss.4} parent=0 // pred_check
    _
  $region31: #{sg_loss.4} parent=0 // pred_check_branch
    %94 = sbr.rel (0) target = $region33
  $region32: #{sg_loss.4} parent=0 // pred_region
    _
  $region33: #{sg_loss.4} parent=0 // pred_fallthru
    _

// kernel: sg_loss.5
$region0: #{sg_loss.5}
  #allocation0 [shape = 'u32[]', space=smem, size = 0x4, offset = 0x4, fixed_abs, tag = 'smem constant byte address 0x4 - core index']
  #allocation1 [shape = 'u32[72,128]{1,0:T(1,128)}', space=vmem, size = 0x9000, scoped, tag = 'internal scratch']
  #allocation2 [shape = 'f32[16,16]{1,0:T(8,128)}', space=vmem, size = 0x2000, scoped, tag = 'scratch operand']
  #allocation3 [shape = 'f32[16,16]{1,0:T(8,128)}', space=vmem, size = 0x2000, scoped, tag = 'scratch operand']
  #allocation4 [shape = 'f32[1,1]{1,0:T(1,128)}', space=vmem, size = 0x200, scoped, tag = 'scratch operand']
  %s0 = inlined_call_operand.vmem [shape: f32[16,128], index: 0, kind: input, shape index: {}, may-alias: {0,1}]
  %s1 = inlined_call_operand.vmem [shape: f32[16,128], index: 1, kind: input, shape index: {}, may-alias: {0,1}]
  %s2 = inlined_call_operand.vmem [shape: f32[16,1], index: 2, kind: input, shape index: {}]
  %s3 = inlined_call_operand.vmem [shape: f32[16,16], index: 3, kind: input, shape index: {}]
  %s4 = inlined_call_operand.vmem [shape: bf16[16,16], index: 4, kind: input, shape index: {}, may-alias: {4,5}]
  %s5 = inlined_call_operand.vmem [shape: bf16[16,16], index: 5, kind: input, shape index: {}, may-alias: {4,5}]
  %s6 = inlined_call_operand.vmem [shape: f32[16,16], index: 6, kind: input, shape index: {}, may-alias: {6,7}]
  %s7 = inlined_call_operand.vmem [shape: f32[16,16], index: 7, kind: input, shape index: {}, may-alias: {6,7}]
  %s8 = inlined_call_operand.vmem [shape: f32[1,8,128], index: 8, kind: output, shape index: {}]
  %s9 = sld [smem:[#allocation0]]
  $region66: #{sg_loss.5} parent=0
    _
  %s11 = ssub.s32 1, %s9
  %s12 = scalar_select 0, %s11, %s9
  // Predicated region
  $region2: #{sg_loss.5} parent=0 // pred_check
    _
  $region3: #{sg_loss.5} parent=0 // pred_check_branch
    %14 = sbr.rel (0) target = $region5
  $region4: #{sg_loss.5} parent=0 // pred_region
    _
  $region5: #{sg_loss.5} parent=0 // pred_fallthru
    _
  // Predicated region
  $region6: #{sg_loss.5} parent=0 // pred_check
    _
  $region7: #{sg_loss.5} parent=0 // pred_check_branch
    %16 = sbr.rel (0) target = $region9
  $region8: #{sg_loss.5} parent=0 // pred_region
    _
  $region9: #{sg_loss.5} parent=0 // pred_fallthru
    _
  // Predicated region
  $region10: #{sg_loss.5} parent=0 // pred_check
    _
  $region11: #{sg_loss.5} parent=0 // pred_check_branch
    %18 = sbr.rel (0) target = $region13
  $region12: #{sg_loss.5} parent=0 // pred_region
    _
  $region13: #{sg_loss.5} parent=0 // pred_fallthru
    _
  // Predicated region
  $region14: #{sg_loss.5} parent=0 // pred_check
    _
  $region15: #{sg_loss.5} parent=0 // pred_check_branch
    %20 = sbr.rel (0) target = $region17
  $region16: #{sg_loss.5} parent=0 // pred_region
    _
  $region17: #{sg_loss.5} parent=0 // pred_fallthru
    _
  // Predicated region
  $region18: #{sg_loss.5} parent=0 // pred_check
    _
  $region19: #{sg_loss.5} parent=0 // pred_check_branch
    %22 = sbr.rel (0) target = $region21
  $region20: #{sg_loss.5} parent=0 // pred_region
    _
  $region21: #{sg_loss.5} parent=0 // pred_fallthru
    _
  // Predicated region
  $region22: #{sg_loss.5} parent=0 // pred_check
    _
  $region23: #{sg_loss.5} parent=0 // pred_check_branch
    %24 = sbr.rel (0) target = $region25
  $region24: #{sg_loss.5} parent=0 // pred_region
    _
  $region25: #{sg_loss.5} parent=0 // pred_fallthru
    _
  // Predicated region
  $region26: #{sg_loss.5} parent=0 // pred_check
    _
  $region27: #{sg_loss.5} parent=0 // pred_check_branch
    %26 = sbr.rel (0) target = $region29
  $region28: #{sg_loss.5} parent=0 // pred_region
    _
  $region29: #{sg_loss.5} parent=0 // pred_fallthru
    _
  // Predicated region
  $region30: #{sg_loss.5} parent=0 // pred_check
    _
  $region31: #{sg_loss.5} parent=0 // pred_check_branch
    %28 = sbr.rel (0) target = $region33
  $region32: #{sg_loss.5} parent=0 // pred_region
    _
  $region33: #{sg_loss.5} parent=0 // pred_fallthru
    _
  %p29 = scmp.eq.s32.totalorder 0, 0
  %p30 = scmp.eq.s32.totalorder 0, 0
  %p31 = pnand %p29, %p30
  %p32 = pneg %p31
  // Predicated region
  $region34: #{sg_loss.5} parent=0 // pred_check
    _
  $region35: #{sg_loss.5} parent=0 // pred_check_branch
    %34 = sbr.rel (%p31) target = $region37
  $region36: #{sg_loss.5} parent=0 // pred_region
    %vm35 = vcmask 0
    %36 = vst.msk [vmem:[#allocation4] sm:$0x1] %vm35, 0.0
  $region37: #{sg_loss.5} parent=0 // pred_fallthru
    _
  // Predicated region
  $region38: #{sg_loss.5} parent=0 // pred_check
    %p37 = pneg %p30
  $region39: #{sg_loss.5} parent=0 // pred_check_branch
    %39 = sbr.rel (%p37) target = $region41
  $region40: #{sg_loss.5} parent=0 // pred_region
    %vm40 = vcmask 130048
    %41 = vst.msk [vmem:[#allocation2] sm:$0xff] %vm40, 0.0
    %42 = vst.msk [vmem:[#allocation2 + $0x8] sm:$0xff] %vm40, 0.0
    %43 = vst.msk [vmem:[#allocation3] sm:$0xff] %vm40, 0.0
    %44 = vst.msk [vmem:[#allocation3 + $0x8] sm:$0xff] %vm40, 0.0
  $region41: #{sg_loss.5} parent=0 // pred_fallthru
    _
  %v45 = vld [vmem:[#allocation2] sm:$0xff]
  %v46 = vld [vmem:[#allocation2 + $0x8] sm:$0xff]
  %v47 = vld [vmem:[%s4] sm:$0xf]
  %v48 = vld [vmem:[%s4 + $0x4] sm:$0xf]
  %v49 = vld [vmem:[%s6] sm:$0xff]
  %v50 = vld [vmem:[%s6 + $0x8] sm:$0xff]
  %v53 = vunpack.c.l.b16 %v47
  %v54 = vunpack.c.l.b16 %v48
  %v55 = vpack.c.b16 %v54, %v53
  %vm56 = vcmask 130048
  %v58 = vsel %vm56, %v55, 0
  %60 = vmatpush.msra.mxu0 0.0
  %61 = vmatpush.msra.mxu0 0.0
  %62 = vmatpush.msra.mxu0 0.0
  %63 = vmatpush.msra.mxu0 0.0
  %64 = vmatpush.msra.mxu0 0.0
  %65 = vmatpush.msra.mxu0 0.0
  %66 = vmatpush.msra.mxu0 0.0
  %67 = vmatpush.msra.mxu0 0.0
  %68 = vmatpush.msra.mxu0 0.0
  %69 = vmatpush.msra.mxu0 0.0
  %70 = vmatpush.msra.mxu0 0.0
  %71 = vmatpush.msra.mxu0 0.0
  %72 = vmatpush.msra.mxu0 0.0
  %73 = vmatpush.msra.mxu0 0.0
  %74 = vmatpush.msra.mxu0 %v50
  %75 = vmatpush.msra.mxu0 %v49
  %76 = vmatmul.bf16.gmra.mxu0 %v58
  %v77 = vpop.f32.mrf.mxu0
  %v78 = vadd.f32 0.0, %v77
  %v79 = vpop.f32.mrf.mxu0
  %v80 = vadd.f32 0.0, %v79
  %81 = vdwg.mxu0
  %v82 = vadd.f32 %v45, %v78
  %v83 = vadd.f32 %v46, %v80
  %84 = vst.msk [vmem:[#allocation2] sm:$0xff] %vm56, %v82
  %85 = vst.msk [vmem:[#allocation2 + $0x8] sm:$0xff] %vm56, %v83
  %v86 = vld [vmem:[#allocation3] sm:$0xff]
  %v87 = vld [vmem:[#allocation3 + $0x8] sm:$0xff]
  %v88 = vld [vmem:[%s5] sm:$0xf]
  %v89 = vld [vmem:[%s5 + $0x4] sm:$0xf]
  %v90 = vld [vmem:[%s7] sm:$0xff]
  %v91 = vld [vmem:[%s7 + $0x8] sm:$0xff]
  %v94 = vunpack.c.l.b16 %v88
  %v95 = vunpack.c.l.b16 %v89
  %v96 = vpack.c.b16 %v95, %v94
  %v98 = vsel %vm56, %v96, 0
  %100 = vmatpush.msra.mxu0 0.0
  %101 = vmatpush.msra.mxu0 0.0
  %102 = vmatpush.msra.mxu0 0.0
  %103 = vmatpush.msra.mxu0 0.0
  %104 = vmatpush.msra.mxu0 0.0
  %105 = vmatpush.msra.mxu0 0.0
  %106 = vmatpush.msra.mxu0 0.0
  %107 = vmatpush.msra.mxu0 0.0
  %108 = vmatpush.msra.mxu0 0.0
  %109 = vmatpush.msra.mxu0 0.0
  %110 = vmatpush.msra.mxu0 0.0
  %111 = vmatpush.msra.mxu0 0.0
  %112 = vmatpush.msra.mxu0 0.0
  %113 = vmatpush.msra.mxu0 0.0
  %114 = vmatpush.msra.mxu0 %v91
  %115 = vmatpush.msra.mxu0 %v90
  %116 = vmatmul.bf16.gmra.mxu0 %v98
  %v117 = vpop.f32.mrf.mxu0
  %v118 = vadd.f32 0.0, %v117
  %v119 = vpop.f32.mrf.mxu0
  %v120 = vadd.f32 0.0, %v119
  %121 = vdwg.mxu0
  %v122 = vadd.f32 %v86, %v118
  %v123 = vadd.f32 %v87, %v120
  %124 = vst.msk [vmem:[#allocation3] sm:$0xff] %vm56, %v122
  %125 = vst.msk [vmem:[#allocation3 + $0x8] sm:$0xff] %vm56, %v123
  // Predicated region
  $region42: #{sg_loss.5} parent=0 // pred_check
    %p126 = pneg %p30
  $region43: #{sg_loss.5} parent=0 // pred_check_branch
    %128 = sbr.rel (%p126) target = $region45
  $region44: #{sg_loss.5} parent=0 // pred_region
    %v129 = vld [vmem:[%s0] sm:$0xff]
    %v130 = vld [vmem:[%s0 + $0x8] sm:$0xff]
    %v131 = vld [vmem:[%s1] sm:$0xff]
    %v132 = vld [vmem:[%s1 + $0x8] sm:$0xff]
    %v133 = vmul.f32 %v129, %v129
    %v134 = vmul.f32 %v130, %v130
    %135 = vadd.xlane.f32.xlu0 %v133
    %v136 = vpop.xlane.xlu0 %135
    %137 = vadd.xlane.f32.xlu0 %v134
    %v138 = vpop.xlane.xlu0 %137
    %v139 = vmul.f32 %v131, %v131
    %v140 = vmul.f32 %v132, %v132
    %141 = vadd.xlane.f32.xlu0 %v139
    %v142 = vpop.xlane.xlu0 %141
    %143 = vadd.xlane.f32.xlu0 %v140
    %v144 = vpop.xlane.xlu0 %143
    %145 = vmatpush.xpose.msra.mxu0 0.0
    %146 = vmatpush.xpose.msra.mxu0 0.0
    %147 = vmatpush.xpose.msra.mxu0 0.0
    %148 = vmatpush.xpose.msra.mxu0 0.0
    %149 = vmatpush.xpose.msra.mxu0 0.0
    %150 = vmatpush.xpose.msra.mxu0 0.0
    %151 = vmatpush.xpose.msra.mxu0 0.0
    %152 = vmatpush.xpose.msra.mxu0 0.0
    %153 = vmatpush.xpose.msra.mxu0 0.0
    %154 = vmatpush.xpose.msra.mxu0 0.0
    %155 = vmatpush.xpose.msra.mxu0 0.0
    %156 = vmatpush.xpose.msra.mxu0 0.0
    %157 = vmatpush.xpose.msra.mxu0 0.0
    %158 = vmatpush.xpose.msra.mxu0 0.0
    %159 = vmatpush.xpose.msra.mxu0 %v132
    %160 = vmatpush.xpose.msra.mxu0 %v131
    %161 = vmatmul.f32.gmra.mxu0 %v129
    %v162 = vpop.f32.mrf.mxu0
    %v163 = vadd.f32 0.0, %v162
    %164 = vmatmul.f32.gmra.mxu0 %v130
    %v165 = vpop.f32.mrf.mxu0
    %v166 = vadd.f32 0.0, %v165
    %167 = vdwg.mxu0
    %168 = vxpose.xlu0.b32.start [1/16] %v142, 128
    %169 = vxpose.xlu0.b32.cont [2/16] %v144, 128
    %170 = vxpose.xlu0.b32.cont [3/16] 0.0, 128
    %171 = vxpose.xlu0.b32.cont [4/16] 0.0, 128
    %172 = vxpose.xlu0.b32.cont [5/16] 0.0, 128
    %173 = vxpose.xlu0.b32.cont [6/16] 0.0, 128
    %174 = vxpose.xlu0.b32.cont [7/16] 0.0, 128
    %175 = vxpose.xlu0.b32.cont [8/16] 0.0, 128
    %176 = vxpose.xlu0.b32.cont [9/16] 0.0, 128
    %177 = vxpose.xlu0.b32.cont [10/16] 0.0, 128
    %178 = vxpose.xlu0.b32.cont [11/16] 0.0, 128
    %179 = vxpose.xlu0.b32.cont [12/16] 0.0, 128
    %180 = vxpose.xlu0.b32.cont [13/16] 0.0, 128
    %181 = vxpose.xlu0.b32.cont [14/16] 0.0, 128
    %182 = vxpose.xlu0.b32.cont [15/16] 0.0, 128
    %183 = vxpose.xlu0.b32.end [16/16] 0.0, 128
    %v184 = vpop.trf.xlu0
    %v185 = vpop.trf.xlu0
    %v186 = vpop.trf.xlu0
    %v187 = vpop.trf.xlu0
    %v188 = vpop.trf.xlu0
    %v189 = vpop.trf.xlu0
    %v190 = vpop.trf.xlu0
    %v191 = vpop.trf.xlu0
    %v192 = vpop.trf.xlu0
    %v193 = vpop.trf.xlu0
    %v194 = vpop.trf.xlu0
    %v195 = vpop.trf.xlu0
    %v196 = vpop.trf.xlu0
    %v197 = vpop.trf.xlu0
    %v198 = vpop.trf.xlu0
    %v199 = vpop.trf.xlu0
    %v200 = vperm.slane %v184, 0
    %v201 = vadd.f32 %v136, %v200
    %v202 = vadd.f32 %v138, %v200
    %v203 = vmul.f32 %v163, 2.0
    %v204 = vmul.f32 %v166, 2.0
    %v205 = vsub.f32 %v201, %v203
    %v206 = vsub.f32 %v202, %v204
    %v207 = vmax.f32 %v205, 0.0
    %v208 = vmax.f32 %v206, 0.0
    %v209 = vrsqrt.pop %v207
    %v210 = vmul.f32 %v209, %v207
    %v211 = vmul.f32 %v210, %v209
    %v212 = vmul.f32 0.5, %v211
    %v213 = vsub.f32 1.5, %v212
    %v214 = vmul.f32 %v209, %v213
    %v215 = vmul.f32 %v207, %v214
    %vm216 = vcmp.eq.f32.partialorder %v207, inf
    %v217 = vsel %vm216, %v207, %v215
    %vm218 = vcmp.eq.f32.partialorder %v207, 0.0
    %v219 = vand.u32 %v207, 2147483648
    %v220 = vsel %vm218, %v219, %v217
    %v221 = vrsqrt.pop %v208
    %v222 = vmul.f32 %v221, %v208
    %v223 = vmul.f32 %v222, %v221
    %v224 = vmul.f32 0.5, %v223
    %v225 = vsub.f32 1.5, %v224
    %v226 = vmul.f32 %v221, %v225
    %v227 = vmul.f32 %v208, %v226
    %vm228 = vcmp.eq.f32.partialorder %v208, inf
    %v229 = vsel %vm228, %v208, %v227
    %vm230 = vcmp.eq.f32.partialorder %v208, 0.0
    %v231 = vand.u32 %v208, 2147483648
    %v232 = vsel %vm230, %v231, %v229
    %v233 = vld [vmem:[%s2] sm:$0xff]
    %v234 = vld [vmem:[%s2 + $0x8] sm:$0xff]
    %236 = vset.pattern.permute.xlu0 0
    %237 = vperm.xlu0 %236, %v233
    %v238 = vpop.permute.xlu0 %237
    %241 = vset.pattern.permute.xlu0 0
    %242 = vperm.xlu0 %241, %v234
    %v243 = vpop.permute.xlu0 %242
    %v245 = vmul.f32 %v220, %v238
    %v246 = vmul.f32 %v232, %v243
    %v247 = vld [vmem:[#allocation2] sm:$0xff]
    %v248 = vld [vmem:[#allocation2 + $0x8] sm:$0xff]
    %v249 = vld [vmem:[#allocation3] sm:$0xff]
    %v250 = vld [vmem:[#allocation3 + $0x8] sm:$0xff]
    %251 = vxpose.xlu0.b32.start [1/16] %v249, 128
    %252 = vxpose.xlu0.b32.cont [2/16] %v250, 128
    %253 = vxpose.xlu0.b32.cont [3/16] 0.0, 128
    %254 = vxpose.xlu0.b32.cont [4/16] 0.0, 128
    %255 = vxpose.xlu0.b32.cont [5/16] 0.0, 128
    %256 = vxpose.xlu0.b32.cont [6/16] 0.0, 128
    %257 = vxpose.xlu0.b32.cont [7/16] 0.0, 128
    %258 = vxpose.xlu0.b32.cont [8/16] 0.0, 128
    %259 = vxpose.xlu0.b32.cont [9/16] 0.0, 128
    %260 = vxpose.xlu0.b32.cont [10/16] 0.0, 128
    %261 = vxpose.xlu0.b32.cont [11/16] 0.0, 128
    %262 = vxpose.xlu0.b32.cont [12/16] 0.0, 128
    %263 = vxpose.xlu0.b32.cont [13/16] 0.0, 128
    %264 = vxpose.xlu0.b32.cont [14/16] 0.0, 128
    %265 = vxpose.xlu0.b32.cont [15/16] 0.0, 128
    %266 = vxpose.xlu0.b32.end [16/16] 0.0, 128
    %v267 = vpop.trf.xlu0
    %v268 = vpop.trf.xlu0
    %v269 = vpop.trf.xlu0
    %v270 = vpop.trf.xlu0
    %v271 = vpop.trf.xlu0
    %v272 = vpop.trf.xlu0
    %v273 = vpop.trf.xlu0
    %v274 = vpop.trf.xlu0
    %v275 = vpop.trf.xlu0
    %v276 = vpop.trf.xlu0
    %v277 = vpop.trf.xlu0
    %v278 = vpop.trf.xlu0
    %v279 = vpop.trf.xlu0
    %v280 = vpop.trf.xlu0
    %v281 = vpop.trf.xlu0
    %v282 = vpop.trf.xlu0
    %v283 = vadd.f32 %v247, %v267
    %v284 = vadd.f32 %v248, %v268
    %v285 = vmul.f32 %v283, 0.1
    %v286 = vmul.f32 %v284, 0.1
    %v287 = vld [vmem:[%s3] sm:$0xff]
    %v288 = vld [vmem:[%s3 + $0x8] sm:$0xff]
    %v289 = vadd.f32 %v287, %v285
    %v290 = vadd.f32 %v288, %v286
    %v291 = vmul.f32 %v289, 0.5
    %v292 = vmul.f32 %v290, 0.5
    %v293 = vmul.f32 %v245, %v245
    %v294 = vmul.f32 %v246, %v246
    %v295 = vmul.f32 %v293, %v291
    %v296 = vmul.f32 %v294, %v292
    %v297 = vsub.f32 1.0, %v245
    %v298 = vsub.f32 1.0, %v246
    %v299 = vmax.f32 %v297, 0.0
    %v300 = vmax.f32 %v298, 0.0
    %v301 = vmul.f32 %v299, %v299
    %v302 = vmul.f32 %v300, %v300
    %v303 = vsub.f32 1.0, %v291
    %v304 = vsub.f32 1.0, %v292
    %v305 = vmul.f32 %v301, %v303
    %v306 = vmul.f32 %v302, %v304
    %v307 = vadd.f32 %v295, %v305
    %v308 = vadd.f32 %v296, %v306
    %p309 = scmp.eq.s32.totalorder 0, 0
    // Predicated region
    $region46: #{sg_loss.5} parent=44 // pred_check
      %p310 = pneg %p309
    $region47: #{sg_loss.5} parent=44 // pred_check_branch
      %312 = sbr.rel (%p310) target = $region49
    $region48: #{sg_loss.5} parent=44 // pred_region
      %v313 = vlaneseq
      %v314 = vshrl.u32 %v313, 7
      %v315 = vadd.s32 %v314, 8
      %v316 = vlaneseq
      %v317 = vand.u32 %v316, 127
      %v318 = vld [vmem:[#allocation4] sm:$0x1]
      %vm319 = vcmp.ne.s32.totalorder %v314, %v317
      %vm320 = vcmp.ne.s32.totalorder %v315, %v317
      %v321 = vsel %vm319, %v307, 0.0
      %v322 = vsel %vm320, %v308, 0.0
      %v323 = vsel %vm56, %v321, 0.0
      %v324 = vsel %vm56, %v322, 0.0
      %v325 = vadd.f32 %v323, %v324
      %326 = vadd.xlane.f32.xlu0 %v325
      %v327 = vpop.xlane.xlu0 %326
      %v328 = vrot.slane %v327, 4
      %v329 = vadd.f32 %v327, %v328
      %v330 = vrot.slane %v329, 2
      %v331 = vadd.f32 %v329, %v330
      %v332 = vrot.slane %v331, 1
      %v333 = vadd.f32 %v331, %v332
      %s334 = vtos %v333
      %v335 = vstv %s334
      %v336 = vadd.f32 %v318, %v335
      %vm337 = vcmask 0
      %338 = vst.msk [vmem:[#allocation4] sm:$0x1] %vm337, %v336
    $region49: #{sg_loss.5} parent=44 // pred_fallthru
      _
    %p339 = scmp.ne.s32.totalorder 0, 0
    // Predicated region
    $region50: #{sg_loss.5} parent=44 // pred_check
      %p340 = pneg %p339
    $region51: #{sg_loss.5} parent=44 // pred_check_branch
      %342 = sbr.rel (%p340) target = $region53
    $region52: #{sg_loss.5} parent=44 // pred_region
      %v343 = vld [vmem:[#allocation4] sm:$0x1]
      %v344 = vsel %vm56, %v307, 0.0
      %v345 = vsel %vm56, %v308, 0.0
      %v346 = vadd.f32 %v344, %v345
      %347 = vadd.xlane.f32.xlu0 %v346
      %v348 = vpop.xlane.xlu0 %347
      %v349 = vrot.slane %v348, 4
      %v350 = vadd.f32 %v348, %v349
      %v351 = vrot.slane %v350, 2
      %v352 = vadd.f32 %v350, %v351
      %v353 = vrot.slane %v352, 1
      %v354 = vadd.f32 %v352, %v353
      %s355 = vtos %v354
      %v356 = vstv %s355
      %v357 = vadd.f32 %v343, %v356
      %vm358 = vcmask 0
      %359 = vst.msk [vmem:[#allocation4] sm:$0x1] %vm358, %v357
    $region53: #{sg_loss.5} parent=44 // pred_fallthru
      _
    // Predicated region
    $region54: #{sg_loss.5} parent=44 // pred_check
      %p360 = pneg %p29
    $region55: #{sg_loss.5} parent=44 // pred_check_branch
      %362 = sbr.rel (%p360) target = $region57
    $region56: #{sg_loss.5} parent=44 // pred_region
      %v363 = vld [vmem:[#allocation4] sm:$0x1]
      %v365 = vperm.slane %v363, 0
      %366 = vset.pattern.permute.xlu0 0
      %367 = vperm.xlu0 %366, %v365
      %v368 = vpop.permute.xlu0 %367
      %370 = vst [vmem:[%s8] sm:$0xff] %v368
    $region57: #{sg_loss.5} parent=44 // pred_fallthru
      _
  $region45: #{sg_loss.5} parent=0 // pred_fallthru
    _
  // Predicated region
  $region58: #{sg_loss.5} parent=0 // pred_check
    _
  $region59: #{sg_loss.5} parent=0 // pred_check_branch
    %372 = sbr.rel (0) target = $region61
  $region60: #{sg_loss.5} parent=0 // pred_region
    _
  $region61: #{sg_loss.5} parent=0 // pred_fallthru
    _
  // Predicated region
  $region62: #{sg_loss.5} parent=0 // pred_check
    _
  $region63: #{sg_loss.5} parent=0 // pred_check_branch
    %374 = sbr.rel (0) target = $region65
  $region64: #{sg_loss.5} parent=0 // pred_region
    _
  $region65: #{sg_loss.5} parent=0 // pred_fallthru
    _

</llo_original>
